<compile_context>
chip_gen: v6e
topology: v6e:2x2x1
jax: 0.10.0
libtpu: 0.0.40
codegen_flags: <defaults>
</compile_context>

<pallas_src>
import math
import numpy as np

import jax
import jax.numpy as jnp
from jax.experimental import pallas as pl
from jax.experimental.pallas import tpu as pltpu

# ---------------- small synthetic config ----------------
B = 2
SEQ_LEN = 16            # config.history_len
PRED_LEN = 8            # config.pred_len (forecasting)
T_TOTAL = SEQ_LEN + PRED_LEN        # 24
ENC_IN = 4              # dataset.n_features
C_OUT = 4
D_MODEL = 32
D_FF = 32
TOP_K = 2               # models.timesnet.top_k
NUM_KERNELS = 2         # models.timesnet.num_kernels
E_LAYERS = 2            # models.timesnet.e_layers
N_MARK = 6              # 'timeF' features for freq='s'
LN_EPS = 1e-5
KCONV = 2 * NUM_KERNELS - 1          # collapsed inception kernel size (3)
KK = KCONV * KCONV

# Static candidate-period table: period = T // freq_index, freq_index in 1..T//2.
CAND_PERIODS = sorted({T_TOTAL // f for f in range(1, T_TOTAL // 2 + 1)})
_slot = np.zeros(T_TOTAL // 2 + 1, np.int32)
for _f in range(1, T_TOTAL // 2 + 1):
    _slot[_f] = CAND_PERIODS.index(T_TOTAL // _f)
_slot[0] = 0            # freq 0 is zeroed before top-k; guard value only
SLOT_OF_FREQ = _slot


# ---------------- static per-candidate im2col gather tables ----------------
def _build_gather_tables():
    """For every static candidate period, precompute flattened-row gather
    indices + border masks for the two 'same'-padded KxK conv stages on the
    (B, length//p, p, C) grid.  Stage 1 gathers from x (valid only t < T,
    i.e. the zero-padded tail is masked); stage 2 gathers from the stage-1
    output over the full padded grid.  Rows beyond a candidate's own padded
    length are dead (masked) filler so every candidate has B*Lmax rows."""
    P = (KCONV - 1) // 2
    lengths = [int(np.ceil(T_TOTAL / p)) * p for p in CAND_PERIODS]
    lmax = max(lengths)
    n = len(CAND_PERIODS)
    src1 = np.zeros((n, B * lmax, KK), np.int32)
    msk1 = np.zeros((n, B * lmax, KK), np.float32)
    src2 = np.zeros((n, B * lmax, KK), np.int32)
    msk2 = np.zeros((n, B * lmax, KK), np.float32)
    for ci, (p, L) in enumerate(zip(CAND_PERIODS, lengths)):
        H, W = L // p, p
        for b in range(B):
            for h in range(H):
                for w in range(W):
                    r = b * lmax + h * W + w
                    j = 0
                    for dy in range(KCONV):
                        for dx in range(KCONV):
                            hh, ww = h + dy - P, w + dx - P
                            if 0 <= hh < H and 0 <= ww < W:
                                t = hh * W + ww
                                if t < T_TOTAL:        # stage-1 source is real data
                                    src1[ci, r, j] = b * T_TOTAL + t
                                    msk1[ci, r, j] = 1.0
                                src2[ci, r, j] = b * lmax + t   # stage-2: padded grid
                                msk2[ci, r, j] = 1.0
                            j += 1
    return src1, msk1, src2, msk2, lmax


SRC1_TAB, MSK1_TAB, SRC2_TAB, MSK2_TAB, LMAX = _build_gather_tables()


# ---------------- Pallas kernels ----------------
def _gelu_exact(x):
    # matches PyTorch nn.GELU() default (erf form); kept in f32 (EUP path)
    return 0.5 * x * (1.0 + jax.lax.erf(x * 0.7071067811865476))


def _conv_mm_kernel(wt_ref, at_ref, bias_ref, o_ref):
    # (N, K) bf16 @ (K, M) bf16 -> (N, M) f32 : output is lane-dense along M.
    acc = jnp.dot(wt_ref[...], at_ref[...], preferred_element_type=jnp.float32)
    o_ref[...] = acc + bias_ref[...]


def _conv_mm_gelu_kernel(wt_ref, at_ref, bias_ref, o_ref):
    acc = jnp.dot(wt_ref[...], at_ref[...], preferred_element_type=jnp.float32)
    o_ref[...] = _gelu_exact(acc + bias_ref[...])


def conv_matmul_t(a_t, w_t, bias, gelu=False):
    """Transposed conv matmul: returns (W @ A)   with A given transposed, i.e.
    out = (N, M) = w_t(N,K) @ a_t(K,M) + bias(N,1).  Lane-dense output."""
    N, _ = w_t.shape
    _, M = a_t.shape
    kern = _conv_mm_gelu_kernel if gelu else _conv_mm_kernel
    return pl.pallas_call(
        kern,
        out_shape=jax.ShapeDtypeStruct((N, M), jnp.float32),
    )(w_t.astype(jnp.bfloat16), a_t.astype(jnp.bfloat16),
      bias.reshape(N, 1).astype(jnp.float32))


def _embed_predict_kernel(at_ref, we_t_ref, pe_t_ref, pw_ref, pb_ref, o_ref):
    # Fused: [token|temporal] embedding matmul + positional add + predict_linear.
    # at: (B, 3C+NM, SEQ), we_t: (D, 3C+NM), pe_t: (D, SEQ),
    # pw: (SEQ, T_TOTAL), pb: (1, T_TOTAL), out: (B, D, T_TOTAL).  All f32.
    for b in range(at_ref.shape[0]):
        emb_t = jnp.dot(we_t_ref[...], at_ref[b],
                        preferred_element_type=jnp.float32) + pe_t_ref[...]
        o_ref[b] = jnp.dot(emb_t, pw_ref[...],
                           preferred_element_type=jnp.float32) + pb_ref[...]


def embed_predict(a_t, embed_w_t, pe_t, predict_w, predict_b):
    Bz = a_t.shape[0]
    return pl.pallas_call(
        _embed_predict_kernel,
        out_shape=jax.ShapeDtypeStruct((Bz, D_MODEL, T_TOTAL), jnp.float32),
    )(a_t.astype(jnp.float32), embed_w_t.astype(jnp.float32),
      pe_t.astype(jnp.float32), predict_w.astype(jnp.float32),
      predict_b.reshape(1, T_TOTAL).astype(jnp.float32))


def _combine_ln_kernel(pw_ref, sel_ref, x_ref, g_ref, b_ref, o_ref):
    # Fused softmax-weighted top-k sum + residual + LayerNorm.
    # pw (B,k) lives in SMEM -> scalar reads, no lane-sparse block, no repeat.
    k = sel_ref.shape[0]
    for bb in range(x_ref.shape[0]):
        y = x_ref[bb]                                   # (T, D)
        for i in range(k):
            y = y + pw_ref[bb, i] * sel_ref[i, bb]
        mu = jnp.mean(y, axis=-1, keepdims=True)
        var = jnp.mean((y - mu) ** 2, axis=-1, keepdims=True)
        y = (y - mu) * jax.lax.rsqrt(var + LN_EPS)
        o_ref[bb] = y * g_ref[...] + b_ref[...]


def combine_residual_layernorm(pw, sel, x, gamma, beta):
    Bz, T, D = x.shape
    return pl.pallas_call(
        _combine_ln_kernel,
        in_specs=[pl.BlockSpec(memory_space=pltpu.MemorySpace.SMEM),
                  pl.BlockSpec(memory_space=pltpu.MemorySpace.VMEM),
                  pl.BlockSpec(memory_space=pltpu.MemorySpace.VMEM),
                  pl.BlockSpec(memory_space=pltpu.MemorySpace.VMEM),
                  pl.BlockSpec(memory_space=pltpu.MemorySpace.VMEM)],
        out_specs=pl.BlockSpec(memory_space=pltpu.MemorySpace.VMEM),
        out_shape=jax.ShapeDtypeStruct((Bz, T, D), jnp.float32),
    )(pw.astype(jnp.float32), sel.astype(jnp.float32), x.astype(jnp.float32),
      gamma.reshape(1, D).astype(jnp.float32),
      beta.reshape(1, D).astype(jnp.float32))


def _head_kernel(x_ref, w_ref, b_ref, s_ref, m_ref, o_ref):
    # Fused head: projection matmul + de-normalization (*stdev, +means).
    for b in range(x_ref.shape[0]):
        y = jnp.dot(x_ref[b], w_ref[...],
                    preferred_element_type=jnp.float32) + b_ref[...]
        o_ref[b] = y * s_ref[b] + m_ref[b]


def project_denorm_head(enc_last, proj_w, proj_b, stdev, means):
    Bz, Tp, _ = enc_last.shape
    C = proj_w.shape[1]
    return pl.pallas_call(
        _head_kernel,
        out_shape=jax.ShapeDtypeStruct((Bz, Tp, C), jnp.float32),
    )(enc_last.astype(jnp.float32), proj_w.astype(jnp.float32),
      proj_b.reshape(1, C).astype(jnp.float32),
      stdev.astype(jnp.float32), means.astype(jnp.float32))


# ---------------- model glue (plain JAX, all inside one jit) ----------------
def times_block_layer(x, blk, ln_g, ln_b):
    """TimesBlock + (shared) LayerNorm; only the TOP_K selected periods are
    actually convolved (data-dependent selection stays on device)."""
    Bz, T, D = x.shape

    # --- FFT_for_Period (no host sync: top-k stays on device) ---
    xf = jnp.fft.rfft(x.astype(jnp.float32), axis=1)
    amp = jnp.abs(xf)                                   # (B, F, D)
    freq = amp.mean(axis=0).mean(axis=-1).at[0].set(0.0)
    _, top = jax.lax.top_k(freq, TOP_K)                 # (k,) device ints
    pw = jax.nn.softmax(amp.mean(axis=-1)[:, top], axis=1)     # (B, k)
    slots = jnp.asarray(SLOT_OF_FREQ)[top]              # (k,) candidate slots

    # --- stage-1 im2col, gathered ONLY for the selected candidates ---
    x_flat = x.reshape(Bz * T, D)
    s1 = jnp.asarray(SRC1_TAB)[slots]                   # (k, B*Lmax, KK)
    m1 = jnp.asarray(MSK1_TAB)[slots]
    a1 = (x_flat[s1] * m1[..., None]).reshape(TOP_K * Bz * LMAX, KK * D)

    # conv1 + GELU (deep K*K*C contraction, lane-dense transposed output)
    mid_t = conv_matmul_t(a1.T, blk["w1_t"], blk["b1"], gelu=True)  # (D_FF, k*B*Lmax)
    mid_flat = mid_t.T                                   # (k*B*Lmax, D_FF)

    # --- stage-2 im2col from mid (same padded grid, per selected candidate) ---
    offs = (jnp.arange(TOP_K, dtype=jnp.int32) * (Bz * LMAX))[:, None, None]
    s2 = jnp.asarray(SRC2_TAB)[slots] + offs             # (k, B*Lmax, KK)
    m2 = jnp.asarray(MSK2_TAB)[slots]
    a2 = (mid_flat[s2] * m2[..., None]).reshape(TOP_K * Bz * LMAX, KK * D_FF)

    out2_t = conv_matmul_t(a2.T, blk["w2_t"], blk["b2"])            # (D, k*B*Lmax)
    sel = out2_t.T.reshape(TOP_K, Bz, LMAX, D)[:, :, :T, :]         # (k, B, T, D)

    # --- fused softmax weighting + residual + LayerNorm (pw via SMEM) ---
    return combine_residual_layernorm(pw, sel, x, ln_g, ln_b)


def positional_embedding(T, d_model):
    position = jnp.arange(T, dtype=jnp.float32)[:, None]
    div_term = jnp.exp(jnp.arange(0, d_model, 2, dtype=jnp.float32)
                       * -(math.log(10000.0) / d_model))
    pe = jnp.zeros((T, d_model), jnp.float32)
    pe = pe.at[:, 0::2].set(jnp.sin(position * div_term))
    pe = pe.at[:, 1::2].set(jnp.cos(position * div_term))
    return pe


def timesnet_forecast(x_enc, x_mark_enc, params):
    means = x_enc.mean(axis=1, keepdims=True)
    xc = x_enc - means
    stdev = jnp.sqrt(jnp.var(xc, axis=1, keepdims=True) + 1e-5)
    xc = xc / stdev

    # --- fused DataEmbedding (circular Conv1d token emb + timeF emb + pos emb,
    #     dropout = identity) AND predict_linear, in one kernel ---
    x3 = jnp.concatenate([jnp.roll(xc, 1, axis=1), xc, jnp.roll(xc, -1, axis=1)],
                         axis=-1)                                   # (B,S,3C)
    a3 = jnp.concatenate([x3, x_mark_enc], axis=-1)                 # (B,S,3C+NM)
    a_t = jnp.transpose(a3, (0, 2, 1))                              # (B,3C+NM,S)
    pe_t = positional_embedding(SEQ_LEN, D_MODEL).T                 # (D,S)
    enc_t = embed_predict(a_t, params["embed_w_t"], pe_t,
                          params["predict_w"], params["predict_b"])  # (B,D,T)
    enc = jnp.transpose(enc_t, (0, 2, 1))                           # (B,T,D)

    for blk in params["blocks"]:
        enc = times_block_layer(enc, blk, params["ln_g"], params["ln_b"])

    # --- fused head: projection + de-normalization + last-PRED_LEN slice ---
    out = project_denorm_head(enc[:, -PRED_LEN:, :],
                              params["proj_w"], params["proj_b"],
                              stdev[:, 0:1, :], means[:, 0:1, :])
    return out                                   # (B, PRED_LEN, C_OUT)


# ---------------- deterministic parameter init ----------------
def init_inception_weights(key, c_in, c_out, num_kernels):
    """Average num_kernels zero-padded Conv2d weights into one KxK conv matrix
    (exactly equivalent to Inception_Block_V1's mean over conv outputs), laid
    out as an im2col weight (K*K*c_in, c_out)."""
    K = 2 * num_kernels - 1
    P = num_kernels - 1
    w_sum = jnp.zeros((K, K, c_in, c_out), jnp.float32)
    b_sum = jnp.zeros((c_out,), jnp.float32)
    keys = jax.random.split(key, 2 * num_kernels)
    for i in range(num_kernels):
        ksz = 2 * i + 1
        w_i = jax.random.normal(keys[2 * i], (c_out, c_in, ksz, ksz),
                                jnp.float32) * 0.1
        b_i = jax.random.normal(keys[2 * i + 1], (c_out,), jnp.float32) * 0.02
        off = P - i
        w_pad = jnp.zeros((c_out, c_in, K, K), jnp.float32)
        w_pad = w_pad.at[:, :, off:off + ksz, off:off + ksz].set(w_i)
        w_sum = w_sum + jnp.transpose(w_pad, (2, 3, 1, 0))   # (K,K,Cin,Cout)
        b_sum = b_sum + b_i
    return ((w_sum / num_kernels).reshape(K * K * c_in, c_out),
            b_sum / num_kernels)


def init_params(key):
    ks = jax.random.split(key, 6 + 2 * E_LAYERS)
    # Conv1d weight (d_model, c_in, 3) -> im2col rows ordered (tap, channel)
    token_w_conv = jax.random.normal(ks[0], (D_MODEL, ENC_IN, 3),
                                     jnp.float32) * 0.1
    token_w = jnp.transpose(token_w_conv, (2, 1, 0)).reshape(3 * ENC_IN, D_MODEL)
    temporal_w = jax.random.normal(ks[1], (N_MARK, D_MODEL), jnp.float32) * 0.1
    embed_w = jnp.concatenate([token_w, temporal_w], axis=0)   # (3C+NM, D)
    params = {
        "embed_w_t": embed_w.T,                                # (D, 3C+NM)
        "predict_w": jax.random.normal(ks[2], (SEQ_LEN, T_TOTAL),
                                       jnp.float32) * 0.1,
        "predict_b": jax.random.normal(ks[3], (T_TOTAL,), jnp.float32) * 0.02,
        "proj_w": jax.random.normal(ks[4], (D_MODEL, C_OUT), jnp.float32) * 0.1,
        "proj_b": jax.random.normal(ks[5], (C_OUT,), jnp.float32) * 0.02,
        "ln_g": jnp.ones((D_MODEL,), jnp.float32),
        "ln_b": jnp.zeros((D_MODEL,), jnp.float32),
        "blocks": [],
    }
    for l in range(E_LAYERS):
        w1, b1 = init_inception_weights(ks[6 + 2 * l], D_MODEL, D_FF, NUM_KERNELS)
        w2, b2 = init_inception_weights(ks[7 + 2 * l], D_FF, D_MODEL, NUM_KERNELS)
        # store transposed (N, K*K*Cin) weights for the lane-dense conv kernels
        params["blocks"].append({"w1_t": w1.T, "b1": b1,
                                 "w2_t": w2.T, "b2": b2})
    return params


if __name__ == "__main__":
    key = jax.random.PRNGKey(0)
    k_p, k_x, k_m = jax.random.split(key, 3)
    params = init_params(k_p)

    x_enc = jax.random.normal(k_x, (B, SEQ_LEN, ENC_IN), jnp.float32)
    x_mark_enc = jax.random.normal(k_m, (B, SEQ_LEN, N_MARK), jnp.float32)

    forecast = jax.jit(timesnet_forecast)       # whole forward is one jit graph
    out = jax.block_until_ready(forecast(x_enc, x_mark_enc, params))
    assert out.shape == (B, PRED_LEN, C_OUT), out.shape
    assert bool(jnp.all(jnp.isfinite(out)))
    print("KERNEL_OK")
</pallas_src>

<mosaic_0001>
module attributes {stable_mosaic.version = 11 : i64} {
  func.func @_embed_predict_kernel(%arg0: memref<2x18x16xf32, #tpu.memory_space<vmem>>, %arg1: memref<32x18xf32, #tpu.memory_space<vmem>>, %arg2: memref<32x16xf32, #tpu.memory_space<vmem>>, %arg3: memref<16x24xf32, #tpu.memory_space<vmem>>, %arg4: memref<1x24xf32, #tpu.memory_space<vmem>>, %arg5: memref<2x32x24xf32, #tpu.memory_space<vmem>>) attributes {dimension_semantics = [], scalar_prefetch = 0 : i64, scratch_operands = 0 : i64, tpu.core_type = #tpu.core_type<tc>} {
    %c0 = arith.constant 0 : index
    %c0_0 = arith.constant 0 : index
    %0 = vector.load %arg1[%c0, %c0_0] : memref<32x18xf32, #tpu.memory_space<vmem>>, vector<32x18xf32>
    %c0_1 = arith.constant 0 : index
    %c0_2 = arith.constant 0 : index
    %c0_3 = arith.constant 0 : index
    %1 = vector.load %arg0[%c0_1, %c0_2, %c0_3] : memref<2x18x16xf32, #tpu.memory_space<vmem>>, vector<1x18x16xf32>
    %2 = vector.shape_cast %1 : vector<1x18x16xf32> to vector<18x16xf32>
    %cst = arith.constant dense<0.000000e+00> : vector<32x16xf32>
    %3 = tpu.matmul %0, %2, %cst {dimension_numbers = #tpu.dot_dimension_numbers<[1], [0], [0], [1], [0, 0, 1, 1], [], []>} : vector<32x18xf32>, vector<18x16xf32>, vector<32x16xf32> -> vector<32x16xf32>
    %c0_4 = arith.constant 0 : index
    %c0_5 = arith.constant 0 : index
    %4 = vector.load %arg2[%c0_4, %c0_5] : memref<32x16xf32, #tpu.memory_space<vmem>>, vector<32x16xf32>
    %5 = arith.addf %3, %4 : vector<32x16xf32>
    %c0_6 = arith.constant 0 : index
    %c0_7 = arith.constant 0 : index
    %6 = vector.load %arg3[%c0_6, %c0_7] : memref<16x24xf32, #tpu.memory_space<vmem>>, vector<16x24xf32>
    %cst_8 = arith.constant dense<0.000000e+00> : vector<32x24xf32>
    %7 = tpu.matmul %5, %6, %cst_8 {dimension_numbers = #tpu.dot_dimension_numbers<[1], [0], [0], [1], [0, 0, 1, 1], [], []>} : vector<32x16xf32>, vector<16x24xf32>, vector<32x24xf32> -> vector<32x24xf32>
    %c0_9 = arith.constant 0 : index
    %c0_10 = arith.constant 0 : index
    %8 = vector.load %arg4[%c0_9, %c0_10] : memref<1x24xf32, #tpu.memory_space<vmem>>, vector<1x24xf32>
    %9 = vector.broadcast %8 : vector<1x24xf32> to vector<32x24xf32>
    %10 = arith.addf %7, %9 : vector<32x24xf32>
    %c0_11 = arith.constant 0 : index
    %c0_12 = arith.constant 0 : index
    %c0_13 = arith.constant 0 : index
    %11 = vector.load %arg5[%c0_11, %c0_12, %c0_13] : memref<2x32x24xf32, #tpu.memory_space<vmem>>, vector<1x32x24xf32>
    %12 = vector.shape_cast %11 : vector<1x32x24xf32> to vector<32x24xf32>
    %13 = vector.shape_cast %10 : vector<32x24xf32> to vector<1x32x24xf32>
    tpu.vector_store %arg5[%c0_11, %c0_12, %c0_13], %13 {strides = array<i32>} : memref<2x32x24xf32, #tpu.memory_space<vmem>>, vector<1x32x24xf32>,
    %c0_14 = arith.constant 0 : index
    %c0_15 = arith.constant 0 : index
    %14 = vector.load %arg1[%c0_14, %c0_15] : memref<32x18xf32, #tpu.memory_space<vmem>>, vector<32x18xf32>
    %c1 = arith.constant 1 : index
    %c0_16 = arith.constant 0 : index
    %c0_17 = arith.constant 0 : index
    %15 = vector.load %arg0[%c1, %c0_16, %c0_17] : memref<2x18x16xf32, #tpu.memory_space<vmem>>, vector<1x18x16xf32>
    %16 = vector.shape_cast %15 : vector<1x18x16xf32> to vector<18x16xf32>
    %cst_18 = arith.constant dense<0.000000e+00> : vector<32x16xf32>
    %17 = tpu.matmul %14, %16, %cst_18 {dimension_numbers = #tpu.dot_dimension_numbers<[1], [0], [0], [1], [0, 0, 1, 1], [], []>} : vector<32x18xf32>, vector<18x16xf32>, vector<32x16xf32> -> vector<32x16xf32>
    %c0_19 = arith.constant 0 : index
    %c0_20 = arith.constant 0 : index
    %18 = vector.load %arg2[%c0_19, %c0_20] : memref<32x16xf32, #tpu.memory_space<vmem>>, vector<32x16xf32>
    %19 = arith.addf %17, %18 : vector<32x16xf32>
    %c0_21 = arith.constant 0 : index
    %c0_22 = arith.constant 0 : index
    %20 = vector.load %arg3[%c0_21, %c0_22] : memref<16x24xf32, #tpu.memory_space<vmem>>, vector<16x24xf32>
    %cst_23 = arith.constant dense<0.000000e+00> : vector<32x24xf32>
    %21 = tpu.matmul %19, %20, %cst_23 {dimension_numbers = #tpu.dot_dimension_numbers<[1], [0], [0], [1], [0, 0, 1, 1], [], []>} : vector<32x16xf32>, vector<16x24xf32>, vector<32x24xf32> -> vector<32x24xf32>
    %c0_24 = arith.constant 0 : index
    %c0_25 = arith.constant 0 : index
    %22 = vector.load %arg4[%c0_24, %c0_25] : memref<1x24xf32, #tpu.memory_space<vmem>>, vector<1x24xf32>
    %23 = vector.broadcast %22 : vector<1x24xf32> to vector<32x24xf32>
    %24 = arith.addf %21, %23 : vector<32x24xf32>
    %c1_26 = arith.constant 1 : index
    %c0_27 = arith.constant 0 : index
    %c0_28 = arith.constant 0 : index
    %25 = vector.load %arg5[%c1_26, %c0_27, %c0_28] : memref<2x32x24xf32, #tpu.memory_space<vmem>>, vector<1x32x24xf32>
    %26 = vector.shape_cast %25 : vector<1x32x24xf32> to vector<32x24xf32>
    %27 = vector.shape_cast %24 : vector<32x24xf32> to vector<1x32x24xf32>
    tpu.vector_store %arg5[%c1_26, %c0_27, %c0_28], %27 {strides = array<i32>} : memref<2x32x24xf32, #tpu.memory_space<vmem>>, vector<1x32x24xf32>,
    return
  }
}

module attributes {stable_mosaic.version = 11 : i64} {
  func.func @_conv_mm_gelu_kernel(%arg0: memref<32x288xbf16, #tpu.memory_space<vmem>>, %arg1: memref<288x96xbf16, #tpu.memory_space<vmem>>, %arg2: memref<32x1xf32, #tpu.memory_space<vmem>>, %arg3: memref<32x96xf32, #tpu.memory_space<vmem>>) attributes {dimension_semantics = [], scalar_prefetch = 0 : i64, scratch_operands = 0 : i64, tpu.core_type = #tpu.core_type<tc>} {
    %c0 = arith.constant 0 : index
    %c0_0 = arith.constant 0 : index
    %0 = vector.load %arg0[%c0, %c0_0] : memref<32x288xbf16, #tpu.memory_space<vmem>>, vector<32x288xbf16>
    %c0_1 = arith.constant 0 : index
    %c0_2 = arith.constant 0 : index
    %1 = vector.load %arg1[%c0_1, %c0_2] : memref<288x96xbf16, #tpu.memory_space<vmem>>, vector<288x96xbf16>
    %cst = arith.constant dense<0.000000e+00> : vector<32x96xf32>
    %2 = tpu.matmul %0, %1, %cst {dimension_numbers = #tpu.dot_dimension_numbers<[1], [0], [0], [1], [0, 0, 1, 1], [], []>} : vector<32x288xbf16>, vector<288x96xbf16>, vector<32x96xf32> -> vector<32x96xf32>
    %c0_3 = arith.constant 0 : index
    %c0_4 = arith.constant 0 : index
    %3 = vector.load %arg2[%c0_3, %c0_4] : memref<32x1xf32, #tpu.memory_space<vmem>>, vector<32x1xf32>
    %4 = vector.broadcast %3 : vector<32x1xf32> to vector<32x96xf32>
    %5 = arith.addf %2, %4 : vector<32x96xf32>
    %cst_5 = arith.constant 5.000000e-01 : f32
    %6 = vector.broadcast %cst_5 : f32 to vector<32x96xf32>
    %7 = arith.mulf %6, %5 : vector<32x96xf32>
    %cst_6 = arith.constant 0.707106769 : f32
    %8 = vector.broadcast %cst_6 : f32 to vector<32x96xf32>
    %9 = arith.mulf %5, %8 : vector<32x96xf32>
    %10 = math.erf %9 : vector<32x96xf32>
    %cst_7 = arith.constant 1.000000e+00 : f32
    %11 = vector.broadcast %cst_7 : f32 to vector<32x96xf32>
    %12 = arith.addf %11, %10 : vector<32x96xf32>
    %13 = arith.mulf %7, %12 : vector<32x96xf32>
    %c0_8 = arith.constant 0 : index
    %c0_9 = arith.constant 0 : index
    %14 = vector.load %arg3[%c0_8, %c0_9] : memref<32x96xf32, #tpu.memory_space<vmem>>, vector<32x96xf32>
    tpu.vector_store %arg3[%c0_8, %c0_9], %13 {strides = array<i32>} : memref<32x96xf32, #tpu.memory_space<vmem>>, vector<32x96xf32>,
    return
  }
}

module attributes {stable_mosaic.version = 11 : i64} {
  func.func @_conv_mm_kernel(%arg0: memref<32x288xbf16, #tpu.memory_space<vmem>>, %arg1: memref<288x96xbf16, #tpu.memory_space<vmem>>, %arg2: memref<32x1xf32, #tpu.memory_space<vmem>>, %arg3: memref<32x96xf32, #tpu.memory_space<vmem>>) attributes {dimension_semantics = [], scalar_prefetch = 0 : i64, scratch_operands = 0 : i64, tpu.core_type = #tpu.core_type<tc>} {
    %c0 = arith.constant 0 : index
    %c0_0 = arith.constant 0 : index
    %0 = vector.load %arg0[%c0, %c0_0] : memref<32x288xbf16, #tpu.memory_space<vmem>>, vector<32x288xbf16>
    %c0_1 = arith.constant 0 : index
    %c0_2 = arith.constant 0 : index
    %1 = vector.load %arg1[%c0_1, %c0_2] : memref<288x96xbf16, #tpu.memory_space<vmem>>, vector<288x96xbf16>
    %cst = arith.constant dense<0.000000e+00> : vector<32x96xf32>
    %2 = tpu.matmul %0, %1, %cst {dimension_numbers = #tpu.dot_dimension_numbers<[1], [0], [0], [1], [0, 0, 1, 1], [], []>} : vector<32x288xbf16>, vector<288x96xbf16>, vector<32x96xf32> -> vector<32x96xf32>
    %c0_3 = arith.constant 0 : index
    %c0_4 = arith.constant 0 : index
    %3 = vector.load %arg2[%c0_3, %c0_4] : memref<32x1xf32, #tpu.memory_space<vmem>>, vector<32x1xf32>
    %4 = vector.broadcast %3 : vector<32x1xf32> to vector<32x96xf32>
    %5 = arith.addf %2, %4 : vector<32x96xf32>
    %c0_5 = arith.constant 0 : index
    %c0_6 = arith.constant 0 : index
    %6 = vector.load %arg3[%c0_5, %c0_6] : memref<32x96xf32, #tpu.memory_space<vmem>>, vector<32x96xf32>
    tpu.vector_store %arg3[%c0_5, %c0_6], %5 {strides = array<i32>} : memref<32x96xf32, #tpu.memory_space<vmem>>, vector<32x96xf32>,
    return
  }
}

module attributes {stable_mosaic.version = 11 : i64} {
  func.func @_head_kernel(%arg0: memref<2x8x32xf32, #tpu.memory_space<vmem>>, %arg1: memref<32x4xf32, #tpu.memory_space<vmem>>, %arg2: memref<1x4xf32, #tpu.memory_space<vmem>>, %arg3: memref<2x1x4xf32, #tpu.memory_space<vmem>>, %arg4: memref<2x1x4xf32, #tpu.memory_space<vmem>>, %arg5: memref<2x8x4xf32, #tpu.memory_space<vmem>>) attributes {dimension_semantics = [], scalar_prefetch = 0 : i64, scratch_operands = 0 : i64, tpu.core_type = #tpu.core_type<tc>} {
    %c0 = arith.constant 0 : index
    %c0_0 = arith.constant 0 : index
    %c0_1 = arith.constant 0 : index
    %0 = vector.load %arg0[%c0, %c0_0, %c0_1] : memref<2x8x32xf32, #tpu.memory_space<vmem>>, vector<1x8x32xf32>
    %1 = vector.shape_cast %0 : vector<1x8x32xf32> to vector<8x32xf32>
    %c0_2 = arith.constant 0 : index
    %c0_3 = arith.constant 0 : index
    %2 = vector.load %arg1[%c0_2, %c0_3] : memref<32x4xf32, #tpu.memory_space<vmem>>, vector<32x4xf32>
    %cst = arith.constant dense<0.000000e+00> : vector<8x4xf32>
    %3 = tpu.matmul %1, %2, %cst {dimension_numbers = #tpu.dot_dimension_numbers<[1], [0], [0], [1], [0, 0, 1, 1], [], []>} : vector<8x32xf32>, vector<32x4xf32>, vector<8x4xf32> -> vector<8x4xf32>
    %c0_4 = arith.constant 0 : index
    %c0_5 = arith.constant 0 : index
    %4 = vector.load %arg2[%c0_4, %c0_5] : memref<1x4xf32, #tpu.memory_space<vmem>>, vector<1x4xf32>
    %5 = vector.broadcast %4 : vector<1x4xf32> to vector<8x4xf32>
    %6 = arith.addf %3, %5 : vector<8x4xf32>
    %c0_6 = arith.constant 0 : index
    %c0_7 = arith.constant 0 : index
    %c0_8 = arith.constant 0 : index
    %7 = vector.load %arg3[%c0_6, %c0_7, %c0_8] : memref<2x1x4xf32, #tpu.memory_space<vmem>>, vector<1x1x4xf32>
    %8 = vector.shape_cast %7 : vector<1x1x4xf32> to vector<1x4xf32>
    %9 = vector.broadcast %8 : vector<1x4xf32> to vector<8x4xf32>
    %10 = arith.mulf %6, %9 : vector<8x4xf32>
    %c0_9 = arith.constant 0 : index
    %c0_10 = arith.constant 0 : index
    %c0_11 = arith.constant 0 : index
    %11 = vector.load %arg4[%c0_9, %c0_10, %c0_11] : memref<2x1x4xf32, #tpu.memory_space<vmem>>, vector<1x1x4xf32>
    %12 = vector.shape_cast %11 : vector<1x1x4xf32> to vector<1x4xf32>
    %13 = vector.broadcast %12 : vector<1x4xf32> to vector<8x4xf32>
    %14 = arith.addf %10, %13 : vector<8x4xf32>
    %c0_12 = arith.constant 0 : index
    %c0_13 = arith.constant 0 : index
    %c0_14 = arith.constant 0 : index
    %15 = vector.load %arg5[%c0_12, %c0_13, %c0_14] : memref<2x8x4xf32, #tpu.memory_space<vmem>>, vector<1x8x4xf32>
    %16 = vector.shape_cast %15 : vector<1x8x4xf32> to vector<8x4xf32>
    %17 = vector.shape_cast %14 : vector<8x4xf32> to vector<1x8x4xf32>
    tpu.vector_store %arg5[%c0_12, %c0_13, %c0_14], %17 {strides = array<i32>} : memref<2x8x4xf32, #tpu.memory_space<vmem>>, vector<1x8x4xf32>,
    %c1 = arith.constant 1 : index
    %c0_15 = arith.constant 0 : index
    %c0_16 = arith.constant 0 : index
    %18 = vector.load %arg0[%c1, %c0_15, %c0_16] : memref<2x8x32xf32, #tpu.memory_space<vmem>>, vector<1x8x32xf32>
    %19 = vector.shape_cast %18 : vector<1x8x32xf32> to vector<8x32xf32>
    %c0_17 = arith.constant 0 : index
    %c0_18 = arith.constant 0 : index
    %20 = vector.load %arg1[%c0_17, %c0_18] : memref<32x4xf32, #tpu.memory_space<vmem>>, vector<32x4xf32>
    %cst_19 = arith.constant dense<0.000000e+00> : vector<8x4xf32>
    %21 = tpu.matmul %19, %20, %cst_19 {dimension_numbers = #tpu.dot_dimension_numbers<[1], [0], [0], [1], [0, 0, 1, 1], [], []>} : vector<8x32xf32>, vector<32x4xf32>, vector<8x4xf32> -> vector<8x4xf32>
    %c0_20 = arith.constant 0 : index
    %c0_21 = arith.constant 0 : index
    %22 = vector.load %arg2[%c0_20, %c0_21] : memref<1x4xf32, #tpu.memory_space<vmem>>, vector<1x4xf32>
    %23 = vector.broadcast %22 : vector<1x4xf32> to vector<8x4xf32>
    %24 = arith.addf %21, %23 : vector<8x4xf32>
    %c1_22 = arith.constant 1 : index
    %c0_23 = arith.constant 0 : index
    %c0_24 = arith.constant 0 : index
    %25 = vector.load %arg3[%c1_22, %c0_23, %c0_24] : memref<2x1x4xf32, #tpu.memory_space<vmem>>, vector<1x1x4xf32>
    %26 = vector.shape_cast %25 : vector<1x1x4xf32> to vector<1x4xf32>
    %27 = vector.broadcast %26 : vector<1x4xf32> to vector<8x4xf32>
    %28 = arith.mulf %24, %27 : vector<8x4xf32>
    %c1_25 = arith.constant 1 : index
    %c0_26 = arith.constant 0 : index
    %c0_27 = arith.constant 0 : index
    %29 = vector.load %arg4[%c1_25, %c0_26, %c0_27] : memref<2x1x4xf32, #tpu.memory_space<vmem>>, vector<1x1x4xf32>
    %30 = vector.shape_cast %29 : vector<1x1x4xf32> to vector<1x4xf32>
    %31 = vector.broadcast %30 : vector<1x4xf32> to vector<8x4xf32>
    %32 = arith.addf %28, %31 : vector<8x4xf32>
    %c1_28 = arith.constant 1 : index
    %c0_29 = arith.constant 0 : index
    %c0_30 = arith.constant 0 : index
    %33 = vector.load %arg5[%c1_28, %c0_29, %c0_30] : memref<2x8x4xf32, #tpu.memory_space<vmem>>, vector<1x8x4xf32>
    %34 = vector.shape_cast %33 : vector<1x8x4xf32> to vector<8x4xf32>
    %35 = vector.shape_cast %32 : vector<8x4xf32> to vector<1x8x4xf32>
    tpu.vector_store %arg5[%c1_28, %c0_29, %c0_30], %35 {strides = array<i32>} : memref<2x8x4xf32, #tpu.memory_space<vmem>>, vector<1x8x4xf32>,
    return
  }
}

module attributes {stable_mosaic.version = 11 : i64} {
  func.func @_combine_ln_kernel(%arg0: memref<2x2xf32, #tpu.memory_space<smem>>, %arg1: memref<2x2x24x32xf32, #tpu.memory_space<vmem>>, %arg2: memref<2x24x32xf32, #tpu.memory_space<vmem>>, %arg3: memref<1x32xf32, #tpu.memory_space<vmem>>, %arg4: memref<1x32xf32, #tpu.memory_space<vmem>>, %arg5: memref<2x24x32xf32, #tpu.memory_space<vmem>>) attributes {dimension_semantics = [], scalar_prefetch = 0 : i64, scratch_operands = 0 : i64, tpu.core_type = #tpu.core_type<tc>} {
    %c0 = arith.constant 0 : index
    %c0_0 = arith.constant 0 : index
    %c0_1 = arith.constant 0 : index
    %0 = vector.load %arg2[%c0, %c0_0, %c0_1] : memref<2x24x32xf32, #tpu.memory_space<vmem>>, vector<1x24x32xf32>
    %1 = vector.shape_cast %0 : vector<1x24x32xf32> to vector<24x32xf32>
    %c0_2 = arith.constant 0 : index
    %c0_3 = arith.constant 0 : index
    %2 = memref.load %arg0[%c0_2, %c0_3] : memref<2x2xf32, #tpu.memory_space<smem>>
    %c0_4 = arith.constant 0 : index
    %c0_5 = arith.constant 0 : index
    %c0_6 = arith.constant 0 : index
    %c0_7 = arith.constant 0 : index
    %3 = vector.load %arg1[%c0_4, %c0_5, %c0_6, %c0_7] : memref<2x2x24x32xf32, #tpu.memory_space<vmem>>, vector<1x1x24x32xf32>
    %4 = vector.shape_cast %3 : vector<1x1x24x32xf32> to vector<24x32xf32>
    %5 = vector.broadcast %2 : f32 to vector<24x32xf32>
    %6 = arith.mulf %5, %4 : vector<24x32xf32>
    %7 = arith.addf %1, %6 : vector<24x32xf32>
    %c0_8 = arith.constant 0 : index
    %c1 = arith.constant 1 : index
    %8 = memref.load %arg0[%c0_8, %c1] : memref<2x2xf32, #tpu.memory_space<smem>>
    %c1_9 = arith.constant 1 : index
    %c0_10 = arith.constant 0 : index
    %c0_11 = arith.constant 0 : index
    %c0_12 = arith.constant 0 : index
    %9 = vector.load %arg1[%c1_9, %c0_10, %c0_11, %c0_12] : memref<2x2x24x32xf32, #tpu.memory_space<vmem>>, vector<1x1x24x32xf32>
    %10 = vector.shape_cast %9 : vector<1x1x24x32xf32> to vector<24x32xf32>
    %11 = vector.broadcast %8 : f32 to vector<24x32xf32>
    %12 = arith.mulf %11, %10 : vector<24x32xf32>
    %13 = arith.addf %7, %12 : vector<24x32xf32>
    %cst = arith.constant dense<0.000000e+00> : vector<24xf32>
    %14 = vector.multi_reduction <add>, %13, %cst [1] : vector<24x32xf32> to vector<24xf32>
    %15 = vector.shape_cast %14 : vector<24xf32> to vector<24x1xf32>
    %cst_13 = arith.constant 3.200000e+01 : f32
    %16 = vector.broadcast %cst_13 : f32 to vector<24x1xf32>
    %17 = arith.divf %15, %16 : vector<24x1xf32>
    %18 = vector.broadcast %17 : vector<24x1xf32> to vector<24x32xf32>
    %19 = arith.subf %13, %18 : vector<24x32xf32>
    %20 = arith.mulf %19, %19 : vector<24x32xf32>
    %cst_14 = arith.constant dense<0.000000e+00> : vector<24xf32>
    %21 = vector.multi_reduction <add>, %20, %cst_14 [1] : vector<24x32xf32> to vector<24xf32>
    %22 = vector.shape_cast %21 : vector<24xf32> to vector<24x1xf32>
    %cst_15 = arith.constant 3.200000e+01 : f32
    %23 = vector.broadcast %cst_15 : f32 to vector<24x1xf32>
    %24 = arith.divf %22, %23 : vector<24x1xf32>
    %25 = vector.broadcast %17 : vector<24x1xf32> to vector<24x32xf32>
    %26 = arith.subf %13, %25 : vector<24x32xf32>
    %cst_16 = arith.constant 9.99999974E-6 : f32
    %27 = vector.broadcast %cst_16 : f32 to vector<24x1xf32>
    %28 = arith.addf %24, %27 : vector<24x1xf32>
    %29 = math.rsqrt %28 : vector<24x1xf32>
    %30 = vector.broadcast %29 : vector<24x1xf32> to vector<24x32xf32>
    %31 = arith.mulf %26, %30 : vector<24x32xf32>
    %c0_17 = arith.constant 0 : index
    %c0_18 = arith.constant 0 : index
    %32 = vector.load %arg3[%c0_17, %c0_18] : memref<1x32xf32, #tpu.memory_space<vmem>>, vector<1x32xf32>
    %33 = vector.broadcast %32 : vector<1x32xf32> to vector<24x32xf32>
    %34 = arith.mulf %31, %33 : vector<24x32xf32>
    %c0_19 = arith.constant 0 : index
    %c0_20 = arith.constant 0 : index
    %35 = vector.load %arg4[%c0_19, %c0_20] : memref<1x32xf32, #tpu.memory_space<vmem>>, vector<1x32xf32>
    %36 = vector.broadcast %35 : vector<1x32xf32> to vector<24x32xf32>
    %37 = arith.addf %34, %36 : vector<24x32xf32>
    %c0_21 = arith.constant 0 : index
    %c0_22 = arith.constant 0 : index
    %c0_23 = arith.constant 0 : index
    %38 = vector.load %arg5[%c0_21, %c0_22, %c0_23] : memref<2x24x32xf32, #tpu.memory_space<vmem>>, vector<1x24x32xf32>
    %39 = vector.shape_cast %38 : vector<1x24x32xf32> to vector<24x32xf32>
    %40 = vector.shape_cast %37 : vector<24x32xf32> to vector<1x24x32xf32>
    tpu.vector_store %arg5[%c0_21, %c0_22, %c0_23], %40 {strides = array<i32>} : memref<2x24x32xf32, #tpu.memory_space<vmem>>, vector<1x24x32xf32>,
    %c1_24 = arith.constant 1 : index
    %c0_25 = arith.constant 0 : index
    %c0_26 = arith.constant 0 : index
    %41 = vector.load %arg2[%c1_24, %c0_25, %c0_26] : memref<2x24x32xf32, #tpu.memory_space<vmem>>, vector<1x24x32xf32>
    %42 = vector.shape_cast %41 : vector<1x24x32xf32> to vector<24x32xf32>
    %c1_27 = arith.constant 1 : index
    %c0_28 = arith.constant 0 : index
    %43 = memref.load %arg0[%c1_27, %c0_28] : memref<2x2xf32, #tpu.memory_space<smem>>
    %c0_29 = arith.constant 0 : index
    %c1_30 = arith.constant 1 : index
    %c0_31 = arith.constant 0 : index
    %c0_32 = arith.constant 0 : index
    %44 = vector.load %arg1[%c0_29, %c1_30, %c0_31, %c0_32] : memref<2x2x24x32xf32, #tpu.memory_space<vmem>>, vector<1x1x24x32xf32>
    %45 = vector.shape_cast %44 : vector<1x1x24x32xf32> to vector<24x32xf32>
    %46 = vector.broadcast %43 : f32 to vector<24x32xf32>
    %47 = arith.mulf %46, %45 : vector<24x32xf32>
    %48 = arith.addf %42, %47 : vector<24x32xf32>
    %c1_33 = arith.constant 1 : index
    %c1_34 = arith.constant 1 : index
    %49 = memref.load %arg0[%c1_33, %c1_34] : memref<2x2xf32, #tpu.memory_space<smem>>
    %c1_35 = arith.constant 1 : index
    %c1_36 = arith.constant 1 : index
    %c0_37 = arith.constant 0 : index
    %c0_38 = arith.constant 0 : index
    %50 = vector.load %arg1[%c1_35, %c1_36, %c0_37, %c0_38] : memref<2x2x24x32xf32, #tpu.memory_space<vmem>>, vector<1x1x24x32xf32>
    %51 = vector.shape_cast %50 : vector<1x1x24x32xf32> to vector<24x32xf32>
    %52 = vector.broadcast %49 : f32 to vector<24x32xf32>
    %53 = arith.mulf %52, %51 : vector<24x32xf32>
    %54 = arith.addf %48, %53 : vector<24x32xf32>
    %cst_39 = arith.constant dense<0.000000e+00> : vector<24xf32>
    %55 = vector.multi_reduction <add>, %54, %cst_39 [1] : vector<24x32xf32> to vector<24xf32>
    %56 = vector.shape_cast %55 : vector<24xf32> to vector<24x1xf32>
    %cst_40 = arith.constant 3.200000e+01 : f32
    %57 = vector.broadcast %cst_40 : f32 to vector<24x1xf32>
    %58 = arith.divf %56, %57 : vector<24x1xf32>
    %59 = vector.broadcast %58 : vector<24x1xf32> to vector<24x32xf32>
    %60 = arith.subf %54, %59 : vector<24x32xf32>
    %61 = arith.mulf %60, %60 : vector<24x32xf32>
    %cst_41 = arith.constant dense<0.000000e+00> : vector<24xf32>
    %62 = vector.multi_reduction <add>, %61, %cst_41 [1] : vector<24x32xf32> to vector<24xf32>
    %63 = vector.shape_cast %62 : vector<24xf32> to vector<24x1xf32>
    %cst_42 = arith.constant 3.200000e+01 : f32
    %64 = vector.broadcast %cst_42 : f32 to vector<24x1xf32>
    %65 = arith.divf %63, %64 : vector<24x1xf32>
    %66 = vector.broadcast %58 : vector<24x1xf32> to vector<24x32xf32>
    %67 = arith.subf %54, %66 : vector<24x32xf32>
    %cst_43 = arith.constant 9.99999974E-6 : f32
    %68 = vector.broadcast %cst_43 : f32 to vector<24x1xf32>
    %69 = arith.addf %65, %68 : vector<24x1xf32>
    %70 = math.rsqrt %69 : vector<24x1xf32>
    %71 = vector.broadcast %70 : vector<24x1xf32> to vector<24x32xf32>
    %72 = arith.mulf %67, %71 : vector<24x32xf32>
    %c0_44 = arith.constant 0 : index
    %c0_45 = arith.constant 0 : index
    %73 = vector.load %arg3[%c0_44, %c0_45] : memref<1x32xf32, #tpu.memory_space<vmem>>, vector<1x32xf32>
    %74 = vector.broadcast %73 : vector<1x32xf32> to vector<24x32xf32>
    %75 = arith.mulf %72, %74 : vector<24x32xf32>
    %c0_46 = arith.constant 0 : index
    %c0_47 = arith.constant 0 : index
    %76 = vector.load %arg4[%c0_46, %c0_47] : memref<1x32xf32, #tpu.memory_space<vmem>>, vector<1x32xf32>
    %77 = vector.broadcast %76 : vector<1x32xf32> to vector<24x32xf32>
    %78 = arith.addf %75, %77 : vector<24x32xf32>
    %c1_48 = arith.constant 1 : index
    %c0_49 = arith.constant 0 : index
    %c0_50 = arith.constant 0 : index
    %79 = vector.load %arg5[%c1_48, %c0_49, %c0_50] : memref<2x24x32xf32, #tpu.memory_space<vmem>>, vector<1x24x32xf32>
    %80 = vector.shape_cast %79 : vector<1x24x32xf32> to vector<24x32xf32>
    %81 = vector.shape_cast %78 : vector<24x32xf32> to vector<1x24x32xf32>
    tpu.vector_store %arg5[%c1_48, %c0_49, %c0_50], %81 {strides = array<i32>} : memref<2x24x32xf32, #tpu.memory_space<vmem>>, vector<1x24x32xf32>,
    return
  }
}

</mosaic_0001>

<llo_original>
// kernel: timesnet_forecast.8
$region0: #{timesnet_forecast.8}
  #allocation0 [shape = 'u32[]', space=smem, size = 0x4, offset = 0x4, fixed_abs, tag = 'smem constant byte address 0x4 - core index']
  #allocation1 [shape = 'u32[144,128]{1,0:T(1,128)}', space=vmem, size = 0x12000, scoped, tag = 'internal scratch']
  %s0 = inlined_call_operand.vmem [shape: f32[2,18,16], index: 0, kind: input, shape index: {}]
  %s1 = inlined_call_operand.vmem [shape: f32[32,18], index: 1, kind: input, shape index: {}]
  %s2 = inlined_call_operand.vmem [shape: f32[32,16], index: 2, kind: input, shape index: {}]
  %s3 = inlined_call_operand.vmem [shape: f32[16,24], index: 3, kind: input, shape index: {}]
  %s4 = inlined_call_operand.vmem [shape: f32[1,24], index: 4, kind: input, shape index: {}]
  %s5 = inlined_call_operand.vmem [shape: f32[2,32,24], index: 5, kind: output, shape index: {}]
  %s6 = sld [smem:[#allocation0]]
  $region30: #{timesnet_forecast.8} parent=0
    _
  %s8 = ssub.s32 1, %s6
  %s9 = scalar_select 0, %s8, %s6
  // Predicated region
  $region2: #{timesnet_forecast.8} parent=0 // pred_check
    _
  $region3: #{timesnet_forecast.8} parent=0 // pred_check_branch
    %11 = sbr.rel (0) target = $region5
  $region4: #{timesnet_forecast.8} parent=0 // pred_region
    _
  $region5: #{timesnet_forecast.8} parent=0 // pred_fallthru
    _
  // Predicated region
  $region6: #{timesnet_forecast.8} parent=0 // pred_check
    _
  $region7: #{timesnet_forecast.8} parent=0 // pred_check_branch
    %13 = sbr.rel (0) target = $region9
  $region8: #{timesnet_forecast.8} parent=0 // pred_region
    _
  $region9: #{timesnet_forecast.8} parent=0 // pred_fallthru
    _
  // Predicated region
  $region10: #{timesnet_forecast.8} parent=0 // pred_check
    _
  $region11: #{timesnet_forecast.8} parent=0 // pred_check_branch
    %15 = sbr.rel (0) target = $region13
  $region12: #{timesnet_forecast.8} parent=0 // pred_region
    _
  $region13: #{timesnet_forecast.8} parent=0 // pred_fallthru
    _
  // Predicated region
  $region14: #{timesnet_forecast.8} parent=0 // pred_check
    _
  $region15: #{timesnet_forecast.8} parent=0 // pred_check_branch
    %17 = sbr.rel (0) target = $region17
  $region16: #{timesnet_forecast.8} parent=0 // pred_region
    _
  $region17: #{timesnet_forecast.8} parent=0 // pred_fallthru
    _
  // Predicated region
  $region18: #{timesnet_forecast.8} parent=0 // pred_check
    _
  $region19: #{timesnet_forecast.8} parent=0 // pred_check_branch
    %19 = sbr.rel (0) target = $region21
  $region20: #{timesnet_forecast.8} parent=0 // pred_region
    _
  $region21: #{timesnet_forecast.8} parent=0 // pred_fallthru
    _
  %v20 = vld [vmem:[%s1] sm:$0xff]
  %v21 = vld [vmem:[%s1 + $0x8] sm:$0xff]
  %v22 = vld [vmem:[%s1 + $0x10] sm:$0xff]
  %v23 = vld [vmem:[%s1 + $0x18] sm:$0xff]
  %v24 = vld [vmem:[%s0] sm:$0xff]
  %v25 = vld [vmem:[%s0 + $0x8] sm:$0xff]
  %v26 = vld [vmem:[%s0 + $0x10] sm:$0x3]
  %v27 = vld [vmem:[%s2] sm:$0xff]
  %v28 = vld [vmem:[%s2 + $0x8] sm:$0xff]
  %v29 = vld [vmem:[%s2 + $0x10] sm:$0xff]
  %v30 = vld [vmem:[%s2 + $0x18] sm:$0xff]
  %vm31 = vcmask 146432
  %v33 = vsel %vm31, %v20, 0
  %v36 = vsel %vm31, %v21, 0
  %v39 = vsel %vm31, %v22, 0
  %v42 = vsel %vm31, %v23, 0
  %vm44 = vcmask 1041408
  %v46 = vsel %vm44, %v26, 0
  %48 = vmatprep.subr.mxu0 0.0
  %49 = vmatpush1.msra.mxu0 0.0
  %50 = vmatprep.subr.mxu0 0.0
  %51 = vmatpush1.msra.mxu0 0.0
  %52 = vmatprep.subr.mxu0 0.0
  %53 = vmatpush1.msra.mxu0 0.0
  %54 = vmatprep.subr.mxu0 0.0
  %55 = vmatpush1.msra.mxu0 0.0
  %56 = vmatprep.subr.mxu0 0.0
  %57 = vmatpush1.msra.mxu0 0.0
  %58 = vmatprep.subr.mxu0 0.0
  %59 = vmatpush1.msra.mxu0 0.0
  %60 = vmatprep.subr.mxu0 0.0
  %61 = vmatpush1.msra.mxu0 0.0
  %62 = vmatprep.subr.mxu0 0.0
  %63 = vmatpush1.msra.mxu0 0.0
  %64 = vmatprep.subr.mxu0 0.0
  %65 = vmatpush1.msra.mxu0 0.0
  %66 = vmatprep.subr.mxu0 0.0
  %67 = vmatpush1.msra.mxu0 0.0
  %68 = vmatprep.subr.mxu0 0.0
  %69 = vmatpush1.msra.mxu0 0.0
  %70 = vmatprep.subr.mxu0 0.0
  %71 = vmatpush1.msra.mxu0 0.0
  %72 = vmatprep.subr.mxu0 0.0
  %73 = vmatpush1.msra.mxu0 0.0
  %74 = vmatprep.subr.mxu0 0.0
  %75 = vmatpush1.msra.mxu0 %v46
  %76 = vmatprep.subr.mxu0 0.0
  %77 = vmatpush1.msra.mxu0 %v25
  %78 = vmatprep.subr.mxu0 0.0
  %79 = vmatpush1.msra.mxu0 %v24
  %80 = vmatprep.subr.mxu0 0.0
  %81 = vmatpush2.msra.mxu0 0.0
  %82 = vmatprep.subr.mxu0 0.0
  %83 = vmatpush2.msra.mxu0 0.0
  %84 = vmatprep.subr.mxu0 0.0
  %85 = vmatpush2.msra.mxu0 0.0
  %86 = vmatprep.subr.mxu0 0.0
  %87 = vmatpush2.msra.mxu0 0.0
  %88 = vmatprep.subr.mxu0 0.0
  %89 = vmatpush2.msra.mxu0 0.0
  %90 = vmatprep.subr.mxu0 0.0
  %91 = vmatpush2.msra.mxu0 0.0
  %92 = vmatprep.subr.mxu0 0.0
  %93 = vmatpush2.msra.mxu0 0.0
  %94 = vmatprep.subr.mxu0 0.0
  %95 = vmatpush2.msra.mxu0 0.0
  %96 = vmatprep.subr.mxu0 0.0
  %97 = vmatpush2.msra.mxu0 0.0
  %98 = vmatprep.subr.mxu0 0.0
  %99 = vmatpush2.msra.mxu0 0.0
  %100 = vmatprep.subr.mxu0 0.0
  %101 = vmatpush2.msra.mxu0 0.0
  %102 = vmatprep.subr.mxu0 0.0
  %103 = vmatpush2.msra.mxu0 0.0
  %104 = vmatprep.subr.mxu0 0.0
  %105 = vmatpush2.msra.mxu0 0.0
  %106 = vmatprep.subr.mxu0 0.0
  %107 = vmatpush2.msra.mxu0 0.0
  %108 = vmatprep.subr.mxu0 0.0
  %109 = vmatpush2.msra.mxu0 0.0
  %110 = vmatprep.subr.mxu0 0.0
  %111 = vmatpush2.msra.mxu0 0.0
  %112 = vmatprep.mubr.f32.mxu0 0.0
  %113 = vmatmul.mubr.f32.gmra.mxu0 %v33
  %v114 = vpop.f32.mrf.mxu0
  %v115 = vadd.f32 %v27, %v114
  %v116 = vpop.f32.mrf.mxu0
  %117 = vmatprep.mubr.f32.mxu0 0.0
  %118 = vmatmul.mubr.f32.gmra.mxu0 %v36
  %v119 = vpop.f32.mrf.mxu0
  %v120 = vadd.f32 %v28, %v119
  %v121 = vpop.f32.mrf.mxu0
  %122 = vmatprep.mubr.f32.mxu0 0.0
  %123 = vmatmul.mubr.f32.gmra.mxu0 %v39
  %v124 = vpop.f32.mrf.mxu0
  %v125 = vadd.f32 %v29, %v124
  %v126 = vpop.f32.mrf.mxu0
  %127 = vmatprep.mubr.f32.mxu0 0.0
  %128 = vmatmul.mubr.f32.gmra.mxu0 %v42
  %v129 = vpop.f32.mrf.mxu0
  %v130 = vadd.f32 %v30, %v129
  %v131 = vpop.f32.mrf.mxu0
  %132 = vdwg.mxu0
  %v133 = vld [vmem:[%s3] sm:$0xff]
  %v134 = vld [vmem:[%s3 + $0x8] sm:$0xff]
  %v135 = vld [vmem:[%s4] sm:$0x1]
  %v137 = vlaneseq
  %v138 = vshrl.u32 %v137, 7
  %v139 = vsub.s32 0, %v138
  %v140 = vrot.slane %v135, %v139
  %vm142 = vcmask 130048
  %v144 = vsel %vm142, %v115, 0
  %v147 = vsel %vm142, %v120, 0
  %v150 = vsel %vm142, %v125, 0
  %v153 = vsel %vm142, %v130, 0
  %155 = vmatprep.subr.mxu0 0.0
  %156 = vmatpush1.msra.mxu0 0.0
  %157 = vmatprep.subr.mxu0 0.0
  %158 = vmatpush1.msra.mxu0 0.0
  %159 = vmatprep.subr.mxu0 0.0
  %160 = vmatpush1.msra.mxu0 0.0
  %161 = vmatprep.subr.mxu0 0.0
  %162 = vmatpush1.msra.mxu0 0.0
  %163 = vmatprep.subr.mxu0 0.0
  %164 = vmatpush1.msra.mxu0 0.0
  %165 = vmatprep.subr.mxu0 0.0
  %166 = vmatpush1.msra.mxu0 0.0
  %167 = vmatprep.subr.mxu0 0.0
  %168 = vmatpush1.msra.mxu0 0.0
  %169 = vmatprep.subr.mxu0 0.0
  %170 = vmatpush1.msra.mxu0 0.0
  %171 = vmatprep.subr.mxu0 0.0
  %172 = vmatpush1.msra.mxu0 0.0
  %173 = vmatprep.subr.mxu0 0.0
  %174 = vmatpush1.msra.mxu0 0.0
  %175 = vmatprep.subr.mxu0 0.0
  %176 = vmatpush1.msra.mxu0 0.0
  %177 = vmatprep.subr.mxu0 0.0
  %178 = vmatpush1.msra.mxu0 0.0
  %179 = vmatprep.subr.mxu0 0.0
  %180 = vmatpush1.msra.mxu0 0.0
  %181 = vmatprep.subr.mxu0 0.0
  %182 = vmatpush1.msra.mxu0 0.0
  %183 = vmatprep.subr.mxu0 0.0
  %184 = vmatpush1.msra.mxu0 %v134
  %185 = vmatprep.subr.mxu0 0.0
  %186 = vmatpush1.msra.mxu0 %v133
  %187 = vmatprep.subr.mxu0 0.0
  %188 = vmatpush2.msra.mxu0 0.0
  %189 = vmatprep.subr.mxu0 0.0
  %190 = vmatpush2.msra.mxu0 0.0
  %191 = vmatprep.subr.mxu0 0.0
  %192 = vmatpush2.msra.mxu0 0.0
  %193 = vmatprep.subr.mxu0 0.0
  %194 = vmatpush2.msra.mxu0 0.0
  %195 = vmatprep.subr.mxu0 0.0
  %196 = vmatpush2.msra.mxu0 0.0
  %197 = vmatprep.subr.mxu0 0.0
  %198 = vmatpush2.msra.mxu0 0.0
  %199 = vmatprep.subr.mxu0 0.0
  %200 = vmatpush2.msra.mxu0 0.0
  %201 = vmatprep.subr.mxu0 0.0
  %202 = vmatpush2.msra.mxu0 0.0
  %203 = vmatprep.subr.mxu0 0.0
  %204 = vmatpush2.msra.mxu0 0.0
  %205 = vmatprep.subr.mxu0 0.0
  %206 = vmatpush2.msra.mxu0 0.0
  %207 = vmatprep.subr.mxu0 0.0
  %208 = vmatpush2.msra.mxu0 0.0
  %209 = vmatprep.subr.mxu0 0.0
  %210 = vmatpush2.msra.mxu0 0.0
  %211 = vmatprep.subr.mxu0 0.0
  %212 = vmatpush2.msra.mxu0 0.0
  %213 = vmatprep.subr.mxu0 0.0
  %214 = vmatpush2.msra.mxu0 0.0
  %215 = vmatprep.subr.mxu0 0.0
  %216 = vmatpush2.msra.mxu0 0.0
  %217 = vmatprep.subr.mxu0 0.0
  %218 = vmatpush2.msra.mxu0 0.0
  %219 = vmatprep.mubr.f32.mxu0 0.0
  %220 = vmatmul.mubr.f32.gmra.mxu0 %v144
  %v221 = vpop.f32.mrf.mxu0
  %v222 = vadd.f32 %v140, %v221
  %v223 = vpop.f32.mrf.mxu0
  %224 = vmatprep.mubr.f32.mxu0 0.0
  %225 = vmatmul.mubr.f32.gmra.mxu0 %v147
  %v226 = vpop.f32.mrf.mxu0
  %v227 = vadd.f32 %v140, %v226
  %v228 = vpop.f32.mrf.mxu0
  %229 = vmatprep.mubr.f32.mxu0 0.0
  %230 = vmatmul.mubr.f32.gmra.mxu0 %v150
  %v231 = vpop.f32.mrf.mxu0
  %v232 = vadd.f32 %v140, %v231
  %v233 = vpop.f32.mrf.mxu0
  %234 = vmatprep.mubr.f32.mxu0 0.0
  %235 = vmatmul.mubr.f32.gmra.mxu0 %v153
  %v236 = vpop.f32.mrf.mxu0
  %v237 = vadd.f32 %v140, %v236
  %v238 = vpop.f32.mrf.mxu0
  %239 = vdwg.mxu0
  %vm240 = vcmask 195584
  %241 = vst.msk [vmem:[%s5] sm:$0xff] %vm240, %v222
  %242 = vst.msk [vmem:[%s5 + $0x8] sm:$0xff] %vm240, %v227
  %243 = vst.msk [vmem:[%s5 + $0x10] sm:$0xff] %vm240, %v232
  %244 = vst.msk [vmem:[%s5 + $0x18] sm:$0xff] %vm240, %v237
  %v245 = vld [vmem:[%s1] sm:$0xff]
  %v246 = vld [vmem:[%s1 + $0x8] sm:$0xff]
  %v247 = vld [vmem:[%s1 + $0x10] sm:$0xff]
  %v248 = vld [vmem:[%s1 + $0x18] sm:$0xff]
  %s249 = scalar_lea.vmem %s0, 24
  %v250 = vld [vmem:[%s249] sm:$0xff]
  %v251 = vld [vmem:[%s249 + $0x8] sm:$0xff]
  %v252 = vld [vmem:[%s249 + $0x10] sm:$0x3]
  %v253 = vld [vmem:[%s2] sm:$0xff]
  %v254 = vld [vmem:[%s2 + $0x8] sm:$0xff]
  %v255 = vld [vmem:[%s2 + $0x10] sm:$0xff]
  %v256 = vld [vmem:[%s2 + $0x18] sm:$0xff]
  %v258 = vsel %vm31, %v245, 0
  %v261 = vsel %vm31, %v246, 0
  %v264 = vsel %vm31, %v247, 0
  %v267 = vsel %vm31, %v248, 0
  %v270 = vsel %vm44, %v252, 0
  %272 = vmatprep.subr.mxu0 0.0
  %273 = vmatpush1.msra.mxu0 0.0
  %274 = vmatprep.subr.mxu0 0.0
  %275 = vmatpush1.msra.mxu0 0.0
  %276 = vmatprep.subr.mxu0 0.0
  %277 = vmatpush1.msra.mxu0 0.0
  %278 = vmatprep.subr.mxu0 0.0
  %279 = vmatpush1.msra.mxu0 0.0
  %280 = vmatprep.subr.mxu0 0.0
  %281 = vmatpush1.msra.mxu0 0.0
  %282 = vmatprep.subr.mxu0 0.0
  %283 = vmatpush1.msra.mxu0 0.0
  %284 = vmatprep.subr.mxu0 0.0
  %285 = vmatpush1.msra.mxu0 0.0
  %286 = vmatprep.subr.mxu0 0.0
  %287 = vmatpush1.msra.mxu0 0.0
  %288 = vmatprep.subr.mxu0 0.0
  %289 = vmatpush1.msra.mxu0 0.0
  %290 = vmatprep.subr.mxu0 0.0
  %291 = vmatpush1.msra.mxu0 0.0
  %292 = vmatprep.subr.mxu0 0.0
  %293 = vmatpush1.msra.mxu0 0.0
  %294 = vmatprep.subr.mxu0 0.0
  %295 = vmatpush1.msra.mxu0 0.0
  %296 = vmatprep.subr.mxu0 0.0
  %297 = vmatpush1.msra.mxu0 0.0
  %298 = vmatprep.subr.mxu0 0.0
  %299 = vmatpush1.msra.mxu0 %v270
  %300 = vmatprep.subr.mxu0 0.0
  %301 = vmatpush1.msra.mxu0 %v251
  %302 = vmatprep.subr.mxu0 0.0
  %303 = vmatpush1.msra.mxu0 %v250
  %304 = vmatprep.subr.mxu0 0.0
  %305 = vmatpush2.msra.mxu0 0.0
  %306 = vmatprep.subr.mxu0 0.0
  %307 = vmatpush2.msra.mxu0 0.0
  %308 = vmatprep.subr.mxu0 0.0
  %309 = vmatpush2.msra.mxu0 0.0
  %310 = vmatprep.subr.mxu0 0.0
  %311 = vmatpush2.msra.mxu0 0.0
  %312 = vmatprep.subr.mxu0 0.0
  %313 = vmatpush2.msra.mxu0 0.0
  %314 = vmatprep.subr.mxu0 0.0
  %315 = vmatpush2.msra.mxu0 0.0
  %316 = vmatprep.subr.mxu0 0.0
  %317 = vmatpush2.msra.mxu0 0.0
  %318 = vmatprep.subr.mxu0 0.0
  %319 = vmatpush2.msra.mxu0 0.0
  %320 = vmatprep.subr.mxu0 0.0
  %321 = vmatpush2.msra.mxu0 0.0
  %322 = vmatprep.subr.mxu0 0.0
  %323 = vmatpush2.msra.mxu0 0.0
  %324 = vmatprep.subr.mxu0 0.0
  %325 = vmatpush2.msra.mxu0 0.0
  %326 = vmatprep.subr.mxu0 0.0
  %327 = vmatpush2.msra.mxu0 0.0
  %328 = vmatprep.subr.mxu0 0.0
  %329 = vmatpush2.msra.mxu0 0.0
  %330 = vmatprep.subr.mxu0 0.0
  %331 = vmatpush2.msra.mxu0 0.0
  %332 = vmatprep.subr.mxu0 0.0
  %333 = vmatpush2.msra.mxu0 0.0
  %334 = vmatprep.subr.mxu0 0.0
  %335 = vmatpush2.msra.mxu0 0.0
  %336 = vmatprep.mubr.f32.mxu0 0.0
  %337 = vmatmul.mubr.f32.gmra.mxu0 %v258
  %v338 = vpop.f32.mrf.mxu0
  %v339 = vadd.f32 %v253, %v338
  %v340 = vpop.f32.mrf.mxu0
  %341 = vmatprep.mubr.f32.mxu0 0.0
  %342 = vmatmul.mubr.f32.gmra.mxu0 %v261
  %v343 = vpop.f32.mrf.mxu0
  %v344 = vadd.f32 %v254, %v343
  %v345 = vpop.f32.mrf.mxu0
  %346 = vmatprep.mubr.f32.mxu0 0.0
  %347 = vmatmul.mubr.f32.gmra.mxu0 %v264
  %v348 = vpop.f32.mrf.mxu0
  %v349 = vadd.f32 %v255, %v348
  %v350 = vpop.f32.mrf.mxu0
  %351 = vmatprep.mubr.f32.mxu0 0.0
  %352 = vmatmul.mubr.f32.gmra.mxu0 %v267
  %v353 = vpop.f32.mrf.mxu0
  %v354 = vadd.f32 %v256, %v353
  %v355 = vpop.f32.mrf.mxu0
  %356 = vdwg.mxu0
  %v357 = vld [vmem:[%s3] sm:$0xff]
  %v358 = vld [vmem:[%s3 + $0x8] sm:$0xff]
  %v359 = vld [vmem:[%s4] sm:$0x1]
  %v361 = vlaneseq
  %v362 = vshrl.u32 %v361, 7
  %v363 = vsub.s32 0, %v362
  %v364 = vrot.slane %v359, %v363
  %v367 = vsel %vm142, %v339, 0
  %v370 = vsel %vm142, %v344, 0
  %v373 = vsel %vm142, %v349, 0
  %v376 = vsel %vm142, %v354, 0
  %378 = vmatprep.subr.mxu0 0.0
  %379 = vmatpush1.msra.mxu0 0.0
  %380 = vmatprep.subr.mxu0 0.0
  %381 = vmatpush1.msra.mxu0 0.0
  %382 = vmatprep.subr.mxu0 0.0
  %383 = vmatpush1.msra.mxu0 0.0
  %384 = vmatprep.subr.mxu0 0.0
  %385 = vmatpush1.msra.mxu0 0.0
  %386 = vmatprep.subr.mxu0 0.0
  %387 = vmatpush1.msra.mxu0 0.0
  %388 = vmatprep.subr.mxu0 0.0
  %389 = vmatpush1.msra.mxu0 0.0
  %390 = vmatprep.subr.mxu0 0.0
  %391 = vmatpush1.msra.mxu0 0.0
  %392 = vmatprep.subr.mxu0 0.0
  %393 = vmatpush1.msra.mxu0 0.0
  %394 = vmatprep.subr.mxu0 0.0
  %395 = vmatpush1.msra.mxu0 0.0
  %396 = vmatprep.subr.mxu0 0.0
  %397 = vmatpush1.msra.mxu0 0.0
  %398 = vmatprep.subr.mxu0 0.0
  %399 = vmatpush1.msra.mxu0 0.0
  %400 = vmatprep.subr.mxu0 0.0
  %401 = vmatpush1.msra.mxu0 0.0
  %402 = vmatprep.subr.mxu0 0.0
  %403 = vmatpush1.msra.mxu0 0.0
  %404 = vmatprep.subr.mxu0 0.0
  %405 = vmatpush1.msra.mxu0 0.0
  %406 = vmatprep.subr.mxu0 0.0
  %407 = vmatpush1.msra.mxu0 %v358
  %408 = vmatprep.subr.mxu0 0.0
  %409 = vmatpush1.msra.mxu0 %v357
  %410 = vmatprep.subr.mxu0 0.0
  %411 = vmatpush2.msra.mxu0 0.0
  %412 = vmatprep.subr.mxu0 0.0
  %413 = vmatpush2.msra.mxu0 0.0
  %414 = vmatprep.subr.mxu0 0.0
  %415 = vmatpush2.msra.mxu0 0.0
  %416 = vmatprep.subr.mxu0 0.0
  %417 = vmatpush2.msra.mxu0 0.0
  %418 = vmatprep.subr.mxu0 0.0
  %419 = vmatpush2.msra.mxu0 0.0
  %420 = vmatprep.subr.mxu0 0.0
  %421 = vmatpush2.msra.mxu0 0.0
  %422 = vmatprep.subr.mxu0 0.0
  %423 = vmatpush2.msra.mxu0 0.0
  %424 = vmatprep.subr.mxu0 0.0
  %425 = vmatpush2.msra.mxu0 0.0
  %426 = vmatprep.subr.mxu0 0.0
  %427 = vmatpush2.msra.mxu0 0.0
  %428 = vmatprep.subr.mxu0 0.0
  %429 = vmatpush2.msra.mxu0 0.0
  %430 = vmatprep.subr.mxu0 0.0
  %431 = vmatpush2.msra.mxu0 0.0
  %432 = vmatprep.subr.mxu0 0.0
  %433 = vmatpush2.msra.mxu0 0.0
  %434 = vmatprep.subr.mxu0 0.0
  %435 = vmatpush2.msra.mxu0 0.0
  %436 = vmatprep.subr.mxu0 0.0
  %437 = vmatpush2.msra.mxu0 0.0
  %438 = vmatprep.subr.mxu0 0.0
  %439 = vmatpush2.msra.mxu0 0.0
  %440 = vmatprep.subr.mxu0 0.0
  %441 = vmatpush2.msra.mxu0 0.0
  %442 = vmatprep.mubr.f32.mxu0 0.0
  %443 = vmatmul.mubr.f32.gmra.mxu0 %v367
  %v444 = vpop.f32.mrf.mxu0
  %v445 = vadd.f32 %v364, %v444
  %v446 = vpop.f32.mrf.mxu0
  %447 = vmatprep.mubr.f32.mxu0 0.0
  %448 = vmatmul.mubr.f32.gmra.mxu0 %v370
  %v449 = vpop.f32.mrf.mxu0
  %v450 = vadd.f32 %v364, %v449
  %v451 = vpop.f32.mrf.mxu0
  %452 = vmatprep.mubr.f32.mxu0 0.0
  %453 = vmatmul.mubr.f32.gmra.mxu0 %v373
  %v454 = vpop.f32.mrf.mxu0
  %v455 = vadd.f32 %v364, %v454
  %v456 = vpop.f32.mrf.mxu0
  %457 = vmatprep.mubr.f32.mxu0 0.0
  %458 = vmatmul.mubr.f32.gmra.mxu0 %v376
  %v459 = vpop.f32.mrf.mxu0
  %v460 = vadd.f32 %v364, %v459
  %v461 = vpop.f32.mrf.mxu0
  %462 = vdwg.mxu0
  %s463 = scalar_lea.vmem %s5, 32
  %464 = vst.msk [vmem:[%s463] sm:$0xff] %vm240, %v445
  %465 = vst.msk [vmem:[%s463 + $0x8] sm:$0xff] %vm240, %v450
  %466 = vst.msk [vmem:[%s463 + $0x10] sm:$0xff] %vm240, %v455
  %467 = vst.msk [vmem:[%s463 + $0x18] sm:$0xff] %vm240, %v460
  // Predicated region
  $region22: #{timesnet_forecast.8} parent=0 // pred_check
    _
  $region23: #{timesnet_forecast.8} parent=0 // pred_check_branch
    %469 = sbr.rel (0) target = $region25
  $region24: #{timesnet_forecast.8} parent=0 // pred_region
    _
  $region25: #{timesnet_forecast.8} parent=0 // pred_fallthru
    _
  // Predicated region
  $region26: #{timesnet_forecast.8} parent=0 // pred_check
    _
  $region27: #{timesnet_forecast.8} parent=0 // pred_check_branch
    %471 = sbr.rel (0) target = $region29
  $region28: #{timesnet_forecast.8} parent=0 // pred_region
    _
  $region29: #{timesnet_forecast.8} parent=0 // pred_fallthru
    _

// kernel: timesnet_forecast.10
$region0: #{timesnet_forecast.10}
  #allocation0 [shape = 'u32[]', space=smem, size = 0x4, offset = 0x4, fixed_abs, tag = 'smem constant byte address 0x4 - core index']
  #allocation1 [shape = 'u32[144,128]{1,0:T(1,128)}', space=vmem, size = 0x12000, scoped, tag = 'internal scratch']
  %s0 = inlined_call_operand.vmem [shape: bf16[32,288], index: 0, kind: input, shape index: {}]
  %s1 = inlined_call_operand.vmem [shape: bf16[288,96], index: 1, kind: input, shape index: {}]
  %s2 = inlined_call_operand.vmem [shape: f32[32,1], index: 2, kind: input, shape index: {}]
  %s3 = inlined_call_operand.vmem [shape: f32[32,96], index: 3, kind: output, shape index: {}]
  %s4 = sld [smem:[#allocation0]]
  $region22: #{timesnet_forecast.10} parent=0
    _
  %s6 = ssub.s32 1, %s4
  %s7 = scalar_select 0, %s6, %s4
  // Predicated region
  $region2: #{timesnet_forecast.10} parent=0 // pred_check
    _
  $region3: #{timesnet_forecast.10} parent=0 // pred_check_branch
    %9 = sbr.rel (0) target = $region5
  $region4: #{timesnet_forecast.10} parent=0 // pred_region
    _
  $region5: #{timesnet_forecast.10} parent=0 // pred_fallthru
    _
  // Predicated region
  $region6: #{timesnet_forecast.10} parent=0 // pred_check
    _
  $region7: #{timesnet_forecast.10} parent=0 // pred_check_branch
    %11 = sbr.rel (0) target = $region9
  $region8: #{timesnet_forecast.10} parent=0 // pred_region
    _
  $region9: #{timesnet_forecast.10} parent=0 // pred_fallthru
    _
  // Predicated region
  $region10: #{timesnet_forecast.10} parent=0 // pred_check
    _
  $region11: #{timesnet_forecast.10} parent=0 // pred_check_branch
    %13 = sbr.rel (0) target = $region13
  $region12: #{timesnet_forecast.10} parent=0 // pred_region
    _
  $region13: #{timesnet_forecast.10} parent=0 // pred_fallthru
    _
  %v15 = vld [vmem:[%s0] sm:$0xff]
  %v16 = vld [vmem:[%s0 + $0x8] sm:$0xf]
  %v17 = vld [vmem:[%s0 + $0xc] sm:$0xff]
  %v18 = vld [vmem:[%s0 + $0x14] sm:$0xf]
  %v19 = vld [vmem:[%s0 + $0x18] sm:$0xff]
  %v20 = vld [vmem:[%s0 + $0x20] sm:$0xf]
  %v21 = vld [vmem:[%s0 + $0x24] sm:$0xff]
  %v22 = vld [vmem:[%s0 + $0x2c] sm:$0xf]
  %v23 = vld [vmem:[%s1] sm:$0xf]
  %v24 = vld [vmem:[%s1 + $0x4] sm:$0xf]
  %v25 = vld [vmem:[%s1 + $0x8] sm:$0xf]
  %v26 = vld [vmem:[%s1 + $0xc] sm:$0xf]
  %v27 = vld [vmem:[%s1 + $0x10] sm:$0xf]
  %v28 = vld [vmem:[%s1 + $0x14] sm:$0xf]
  %v29 = vld [vmem:[%s1 + $0x18] sm:$0xf]
  %v30 = vld [vmem:[%s1 + $0x1c] sm:$0xf]
  %v31 = vld [vmem:[%s1 + $0x20] sm:$0xf]
  %v32 = vld [vmem:[%s1 + $0x24] sm:$0xf]
  %v33 = vld [vmem:[%s1 + $0x28] sm:$0xf]
  %v34 = vld [vmem:[%s1 + $0x2c] sm:$0xf]
  %v35 = vld [vmem:[%s1 + $0x30] sm:$0xf]
  %v36 = vld [vmem:[%s1 + $0x34] sm:$0xf]
  %v37 = vld [vmem:[%s1 + $0x38] sm:$0xf]
  %v38 = vld [vmem:[%s1 + $0x3c] sm:$0xf]
  %v39 = vld [vmem:[%s1 + $0x40] sm:$0xf]
  %v40 = vld [vmem:[%s1 + $0x44] sm:$0xf]
  %v41 = vld [vmem:[%s1 + $0x48] sm:$0xf]
  %v42 = vld [vmem:[%s1 + $0x4c] sm:$0xf]
  %v43 = vld [vmem:[%s1 + $0x50] sm:$0xf]
  %v44 = vld [vmem:[%s1 + $0x54] sm:$0xf]
  %v45 = vld [vmem:[%s1 + $0x58] sm:$0xf]
  %v46 = vld [vmem:[%s1 + $0x5c] sm:$0xf]
  %v47 = vld [vmem:[%s1 + $0x60] sm:$0xf]
  %v48 = vld [vmem:[%s1 + $0x64] sm:$0xf]
  %v49 = vld [vmem:[%s1 + $0x68] sm:$0xf]
  %v50 = vld [vmem:[%s1 + $0x6c] sm:$0xf]
  %v51 = vld [vmem:[%s1 + $0x70] sm:$0xf]
  %v52 = vld [vmem:[%s1 + $0x74] sm:$0xf]
  %v53 = vld [vmem:[%s1 + $0x78] sm:$0xf]
  %v54 = vld [vmem:[%s1 + $0x7c] sm:$0xf]
  %v55 = vld [vmem:[%s1 + $0x80] sm:$0xf]
  %v56 = vld [vmem:[%s1 + $0x84] sm:$0xf]
  %v57 = vld [vmem:[%s1 + $0x88] sm:$0xf]
  %v58 = vld [vmem:[%s1 + $0x8c] sm:$0xf]
  %v59 = vld [vmem:[%s2] sm:$0xff]
  %v60 = vld [vmem:[%s2 + $0x8] sm:$0xff]
  %v61 = vld [vmem:[%s2 + $0x10] sm:$0xff]
  %v62 = vld [vmem:[%s2 + $0x18] sm:$0xff]
  %64 = vset.pattern.permute.xlu0 0
  %65 = vperm.xlu0 %64, %v59
  %v66 = vpop.permute.xlu0 %65
  %69 = vset.pattern.permute.xlu0 0
  %70 = vperm.xlu0 %69, %v60
  %v71 = vpop.permute.xlu0 %70
  %74 = vset.pattern.permute.xlu0 0
  %75 = vperm.xlu0 %74, %v61
  %v76 = vpop.permute.xlu0 %75
  %79 = vset.pattern.permute.xlu0 0
  %80 = vperm.xlu0 %79, %v62
  %v81 = vpop.permute.xlu0 %80
  %v91 = vunpack.c.l.b16 %v15
  %v92 = vunpack.c.h.b16 %v15
  %v93 = vunpack.c.l.b16 %v16
  %v94 = vunpack.c.l.b16 %v17
  %v95 = vunpack.c.h.b16 %v17
  %v96 = vunpack.c.l.b16 %v18
  %v97 = vunpack.c.l.b16 %v19
  %v98 = vunpack.c.h.b16 %v19
  %v99 = vunpack.c.l.b16 %v20
  %v100 = vunpack.c.l.b16 %v21
  %v101 = vunpack.c.h.b16 %v21
  %v102 = vunpack.c.l.b16 %v22
  %v103 = vpack.c.b16 %v94, %v91
  %v104 = vpack.c.b16 %v95, %v92
  %v105 = vpack.c.b16 %v96, %v93
  %v106 = vpack.c.b16 %v100, %v97
  %v107 = vpack.c.b16 %v101, %v98
  %v108 = vpack.c.b16 %v102, %v99
  %v149 = vunpack.c.l.b16 %v23
  %v150 = vunpack.c.l.b16 %v24
  %v151 = vunpack.c.l.b16 %v25
  %v152 = vunpack.c.l.b16 %v26
  %v153 = vunpack.c.l.b16 %v27
  %v154 = vunpack.c.l.b16 %v28
  %v155 = vunpack.c.l.b16 %v29
  %v156 = vunpack.c.l.b16 %v30
  %v157 = vunpack.c.l.b16 %v31
  %v158 = vunpack.c.l.b16 %v32
  %v159 = vunpack.c.l.b16 %v33
  %v160 = vunpack.c.l.b16 %v34
  %v161 = vunpack.c.l.b16 %v35
  %v162 = vunpack.c.l.b16 %v36
  %v163 = vunpack.c.l.b16 %v37
  %v164 = vunpack.c.l.b16 %v38
  %v165 = vunpack.c.l.b16 %v39
  %v166 = vunpack.c.l.b16 %v40
  %v167 = vunpack.c.l.b16 %v41
  %v168 = vunpack.c.l.b16 %v42
  %v169 = vunpack.c.l.b16 %v43
  %v170 = vunpack.c.l.b16 %v44
  %v171 = vunpack.c.l.b16 %v45
  %v172 = vunpack.c.l.b16 %v46
  %v173 = vunpack.c.l.b16 %v47
  %v174 = vunpack.c.l.b16 %v48
  %v175 = vunpack.c.l.b16 %v49
  %v176 = vunpack.c.l.b16 %v50
  %v177 = vunpack.c.l.b16 %v51
  %v178 = vunpack.c.l.b16 %v52
  %v179 = vunpack.c.l.b16 %v53
  %v180 = vunpack.c.l.b16 %v54
  %v181 = vunpack.c.l.b16 %v55
  %v182 = vunpack.c.l.b16 %v56
  %v183 = vunpack.c.l.b16 %v57
  %v184 = vunpack.c.l.b16 %v58
  %v185 = vpack.c.b16 %v150, %v149
  %v186 = vpack.c.b16 %v152, %v151
  %v187 = vpack.c.b16 %v154, %v153
  %v188 = vpack.c.b16 %v156, %v155
  %v189 = vpack.c.b16 %v158, %v157
  %v190 = vpack.c.b16 %v160, %v159
  %v191 = vpack.c.b16 %v162, %v161
  %v192 = vpack.c.b16 %v164, %v163
  %v193 = vpack.c.b16 %v166, %v165
  %v194 = vpack.c.b16 %v168, %v167
  %v195 = vpack.c.b16 %v170, %v169
  %v196 = vpack.c.b16 %v172, %v171
  %v197 = vpack.c.b16 %v174, %v173
  %v198 = vpack.c.b16 %v176, %v175
  %v199 = vpack.c.b16 %v178, %v177
  %v200 = vpack.c.b16 %v180, %v179
  %v201 = vpack.c.b16 %v182, %v181
  %v202 = vpack.c.b16 %v184, %v183
  %vm221 = vcmask 261120
  %v223 = vsel %vm221, %v105, 0
  %v226 = vsel %vm221, %v108, 0
  %228 = vmatprep.subr.bf16.mxu0 0
  %229 = vmatpush1.bf16.msra.mxu0 %v192
  %230 = vmatprep.subr.bf16.mxu0 0
  %231 = vmatpush1.bf16.msra.mxu0 %v191
  %232 = vmatprep.subr.bf16.mxu0 0
  %233 = vmatpush1.bf16.msra.mxu0 %v190
  %234 = vmatprep.subr.bf16.mxu0 0
  %235 = vmatpush1.bf16.msra.mxu0 %v189
  %236 = vmatprep.subr.bf16.mxu0 0
  %237 = vmatpush1.bf16.msra.mxu0 %v188
  %238 = vmatprep.subr.bf16.mxu0 0
  %239 = vmatpush1.bf16.msra.mxu0 %v187
  %240 = vmatprep.subr.bf16.mxu0 0
  %241 = vmatpush1.bf16.msra.mxu0 %v186
  %242 = vmatprep.subr.bf16.mxu0 0
  %243 = vmatpush1.bf16.msra.mxu0 %v185
  %244 = vmatprep.subr.bf16.mxu0 0
  %245 = vmatpush2.bf16.msra.mxu0 %v200
  %246 = vmatprep.subr.bf16.mxu0 0
  %247 = vmatpush2.bf16.msra.mxu0 %v199
  %248 = vmatprep.subr.bf16.mxu0 0
  %249 = vmatpush2.bf16.msra.mxu0 %v198
  %250 = vmatprep.subr.bf16.mxu0 0
  %251 = vmatpush2.bf16.msra.mxu0 %v197
  %252 = vmatprep.subr.bf16.mxu0 0
  %253 = vmatpush2.bf16.msra.mxu0 %v196
  %254 = vmatprep.subr.bf16.mxu0 0
  %255 = vmatpush2.bf16.msra.mxu0 %v195
  %256 = vmatprep.subr.bf16.mxu0 0
  %257 = vmatpush2.bf16.msra.mxu0 %v194
  %258 = vmatprep.subr.bf16.mxu0 0
  %259 = vmatpush2.bf16.msra.mxu0 %v193
  %260 = vmatprep.mubr.bf16.mxu0 %v104
  %261 = vmatmul.mubr.bf16.gmra.mxu0 %v103
  %v262 = vpop.f32.mrf.mxu0
  %v263 = vadd.f32 %v66, %v262
  %v264 = vpop.f32.mrf.mxu0
  %v265 = vpop.f32.mrf.mxu0
  %v266 = vadd.f32 %v71, %v265
  %v267 = vpop.f32.mrf.mxu0
  %268 = vmatprep.mubr.bf16.mxu0 %v107
  %269 = vmatmul.mubr.bf16.gmra.mxu0 %v106
  %v270 = vpop.f32.mrf.mxu0
  %v271 = vadd.f32 %v76, %v270
  %v272 = vpop.f32.mrf.mxu0
  %v273 = vpop.f32.mrf.mxu0
  %v274 = vadd.f32 %v81, %v273
  %v275 = vpop.f32.mrf.mxu0
  %276 = vdwg.mxu0
  %277 = vmatprep.subr.bf16.mxu0 0
  %278 = vmatpush1.bf16.msra.mxu0 0
  %279 = vmatprep.subr.bf16.mxu0 0
  %280 = vmatpush1.bf16.msra.mxu0 0
  %281 = vmatprep.subr.bf16.mxu0 0
  %282 = vmatpush1.bf16.msra.mxu0 0
  %283 = vmatprep.subr.bf16.mxu0 0
  %284 = vmatpush1.bf16.msra.mxu0 0
  %285 = vmatprep.subr.bf16.mxu0 0
  %286 = vmatpush1.bf16.msra.mxu0 0
  %287 = vmatprep.subr.bf16.mxu0 0
  %288 = vmatpush1.bf16.msra.mxu0 0
  %289 = vmatprep.subr.bf16.mxu0 0
  %290 = vmatpush1.bf16.msra.mxu0 %v202
  %291 = vmatprep.subr.bf16.mxu0 0
  %292 = vmatpush1.bf16.msra.mxu0 %v201
  %293 = vmatprep.subr.bf16.mxu0 0
  %294 = vmatpush2.bf16.msra.mxu0 0
  %295 = vmatprep.subr.bf16.mxu0 0
  %296 = vmatpush2.bf16.msra.mxu0 0
  %297 = vmatprep.subr.bf16.mxu0 0
  %298 = vmatpush2.bf16.msra.mxu0 0
  %299 = vmatprep.subr.bf16.mxu0 0
  %300 = vmatpush2.bf16.msra.mxu0 0
  %301 = vmatprep.subr.bf16.mxu0 0
  %302 = vmatpush2.bf16.msra.mxu0 0
  %303 = vmatprep.subr.bf16.mxu0 0
  %304 = vmatpush2.bf16.msra.mxu0 0
  %305 = vmatprep.subr.bf16.mxu0 0
  %306 = vmatpush2.bf16.msra.mxu0 0
  %307 = vmatprep.subr.bf16.mxu0 0
  %308 = vmatpush2.bf16.msra.mxu0 0
  %309 = vmatprep.mubr.bf16.mxu0 0
  %310 = vmatmul.mubr.bf16.gmra.mxu0 %v223
  %v311 = vpop.f32.mrf.mxu0
  %v312 = vadd.f32 %v263, %v311
  %v313 = vpop.f32.mrf.mxu0
  %v314 = vpop.f32.mrf.mxu0
  %v315 = vadd.f32 %v266, %v314
  %v316 = vpop.f32.mrf.mxu0
  %317 = vmatprep.mubr.bf16.mxu0 0
  %318 = vmatmul.mubr.bf16.gmra.mxu0 %v226
  %v319 = vpop.f32.mrf.mxu0
  %v320 = vadd.f32 %v271, %v319
  %v321 = vpop.f32.mrf.mxu0
  %v322 = vpop.f32.mrf.mxu0
  %v323 = vadd.f32 %v274, %v322
  %v324 = vpop.f32.mrf.mxu0
  %325 = vdwg.mxu0
  %vm326 = vcmask 785408
  %327 = vst.msk [vmem:[%s3] sm:$0xff] %vm326, %v312
  %328 = vst.msk [vmem:[%s3 + $0x8] sm:$0xff] %vm326, %v315
  %329 = vst.msk [vmem:[%s3 + $0x10] sm:$0xff] %vm326, %v320
  %330 = vst.msk [vmem:[%s3 + $0x18] sm:$0xff] %vm326, %v323
  // Predicated region
  $region14: #{timesnet_forecast.10} parent=0 // pred_check
    _
  $region15: #{timesnet_forecast.10} parent=0 // pred_check_branch
    %332 = sbr.rel (0) target = $region17
  $region16: #{timesnet_forecast.10} parent=0 // pred_region
    _
  $region17: #{timesnet_forecast.10} parent=0 // pred_fallthru
    _
  // Predicated region
  $region18: #{timesnet_forecast.10} parent=0 // pred_check
    _
  $region19: #{timesnet_forecast.10} parent=0 // pred_check_branch
    %334 = sbr.rel (0) target = $region21
  $region20: #{timesnet_forecast.10} parent=0 // pred_region
    _
  $region21: #{timesnet_forecast.10} parent=0 // pred_fallthru
    _

// kernel: timesnet_forecast.9
$region0: #{timesnet_forecast.9}
  #allocation0 [shape = 'u32[]', space=smem, size = 0x4, offset = 0x4, fixed_abs, tag = 'smem constant byte address 0x4 - core index']
  #allocation1 [shape = 'u32[144,128]{1,0:T(1,128)}', space=vmem, size = 0x12000, scoped, tag = 'internal scratch']
  %s0 = inlined_call_operand.vmem [shape: bf16[32,288], index: 0, kind: input, shape index: {}]
  %s1 = inlined_call_operand.vmem [shape: bf16[288,96], index: 1, kind: input, shape index: {}]
  %s2 = inlined_call_operand.vmem [shape: f32[32,1], index: 2, kind: input, shape index: {}]
  %s3 = inlined_call_operand.vmem [shape: f32[32,96], index: 3, kind: output, shape index: {}]
  %s4 = sld [smem:[#allocation0]]
  $region22: #{timesnet_forecast.9} parent=0
    _
  %s6 = ssub.s32 1, %s4
  %s7 = scalar_select 0, %s6, %s4
  // Predicated region
  $region2: #{timesnet_forecast.9} parent=0 // pred_check
    _
  $region3: #{timesnet_forecast.9} parent=0 // pred_check_branch
    %9 = sbr.rel (0) target = $region5
  $region4: #{timesnet_forecast.9} parent=0 // pred_region
    _
  $region5: #{timesnet_forecast.9} parent=0 // pred_fallthru
    _
  // Predicated region
  $region6: #{timesnet_forecast.9} parent=0 // pred_check
    _
  $region7: #{timesnet_forecast.9} parent=0 // pred_check_branch
    %11 = sbr.rel (0) target = $region9
  $region8: #{timesnet_forecast.9} parent=0 // pred_region
    _
  $region9: #{timesnet_forecast.9} parent=0 // pred_fallthru
    _
  // Predicated region
  $region10: #{timesnet_forecast.9} parent=0 // pred_check
    _
  $region11: #{timesnet_forecast.9} parent=0 // pred_check_branch
    %13 = sbr.rel (0) target = $region13
  $region12: #{timesnet_forecast.9} parent=0 // pred_region
    _
  $region13: #{timesnet_forecast.9} parent=0 // pred_fallthru
    _
  %v15 = vld [vmem:[%s0] sm:$0xff]
  %v16 = vld [vmem:[%s0 + $0x8] sm:$0xf]
  %v17 = vld [vmem:[%s0 + $0xc] sm:$0xff]
  %v18 = vld [vmem:[%s0 + $0x14] sm:$0xf]
  %v19 = vld [vmem:[%s0 + $0x18] sm:$0xff]
  %v20 = vld [vmem:[%s0 + $0x20] sm:$0xf]
  %v21 = vld [vmem:[%s0 + $0x24] sm:$0xff]
  %v22 = vld [vmem:[%s0 + $0x2c] sm:$0xf]
  %v23 = vld [vmem:[%s1] sm:$0xf]
  %v24 = vld [vmem:[%s1 + $0x4] sm:$0xf]
  %v25 = vld [vmem:[%s1 + $0x8] sm:$0xf]
  %v26 = vld [vmem:[%s1 + $0xc] sm:$0xf]
  %v27 = vld [vmem:[%s1 + $0x10] sm:$0xf]
  %v28 = vld [vmem:[%s1 + $0x14] sm:$0xf]
  %v29 = vld [vmem:[%s1 + $0x18] sm:$0xf]
  %v30 = vld [vmem:[%s1 + $0x1c] sm:$0xf]
  %v31 = vld [vmem:[%s1 + $0x20] sm:$0xf]
  %v32 = vld [vmem:[%s1 + $0x24] sm:$0xf]
  %v33 = vld [vmem:[%s1 + $0x28] sm:$0xf]
  %v34 = vld [vmem:[%s1 + $0x2c] sm:$0xf]
  %v35 = vld [vmem:[%s1 + $0x30] sm:$0xf]
  %v36 = vld [vmem:[%s1 + $0x34] sm:$0xf]
  %v37 = vld [vmem:[%s1 + $0x38] sm:$0xf]
  %v38 = vld [vmem:[%s1 + $0x3c] sm:$0xf]
  %v39 = vld [vmem:[%s1 + $0x40] sm:$0xf]
  %v40 = vld [vmem:[%s1 + $0x44] sm:$0xf]
  %v41 = vld [vmem:[%s1 + $0x48] sm:$0xf]
  %v42 = vld [vmem:[%s1 + $0x4c] sm:$0xf]
  %v43 = vld [vmem:[%s1 + $0x50] sm:$0xf]
  %v44 = vld [vmem:[%s1 + $0x54] sm:$0xf]
  %v45 = vld [vmem:[%s1 + $0x58] sm:$0xf]
  %v46 = vld [vmem:[%s1 + $0x5c] sm:$0xf]
  %v47 = vld [vmem:[%s1 + $0x60] sm:$0xf]
  %v48 = vld [vmem:[%s1 + $0x64] sm:$0xf]
  %v49 = vld [vmem:[%s1 + $0x68] sm:$0xf]
  %v50 = vld [vmem:[%s1 + $0x6c] sm:$0xf]
  %v51 = vld [vmem:[%s1 + $0x70] sm:$0xf]
  %v52 = vld [vmem:[%s1 + $0x74] sm:$0xf]
  %v53 = vld [vmem:[%s1 + $0x78] sm:$0xf]
  %v54 = vld [vmem:[%s1 + $0x7c] sm:$0xf]
  %v55 = vld [vmem:[%s1 + $0x80] sm:$0xf]
  %v56 = vld [vmem:[%s1 + $0x84] sm:$0xf]
  %v57 = vld [vmem:[%s1 + $0x88] sm:$0xf]
  %v58 = vld [vmem:[%s1 + $0x8c] sm:$0xf]
  %v59 = vld [vmem:[%s2] sm:$0xff]
  %v60 = vld [vmem:[%s2 + $0x8] sm:$0xff]
  %v61 = vld [vmem:[%s2 + $0x10] sm:$0xff]
  %v62 = vld [vmem:[%s2 + $0x18] sm:$0xff]
  %64 = vset.pattern.permute.xlu0 0
  %65 = vperm.xlu0 %64, %v59
  %v66 = vpop.permute.xlu0 %65
  %69 = vset.pattern.permute.xlu0 0
  %70 = vperm.xlu0 %69, %v60
  %v71 = vpop.permute.xlu0 %70
  %74 = vset.pattern.permute.xlu0 0
  %75 = vperm.xlu0 %74, %v61
  %v76 = vpop.permute.xlu0 %75
  %79 = vset.pattern.permute.xlu0 0
  %80 = vperm.xlu0 %79, %v62
  %v81 = vpop.permute.xlu0 %80
  %v91 = vunpack.c.l.b16 %v15
  %v92 = vunpack.c.h.b16 %v15
  %v93 = vunpack.c.l.b16 %v16
  %v94 = vunpack.c.l.b16 %v17
  %v95 = vunpack.c.h.b16 %v17
  %v96 = vunpack.c.l.b16 %v18
  %v97 = vunpack.c.l.b16 %v19
  %v98 = vunpack.c.h.b16 %v19
  %v99 = vunpack.c.l.b16 %v20
  %v100 = vunpack.c.l.b16 %v21
  %v101 = vunpack.c.h.b16 %v21
  %v102 = vunpack.c.l.b16 %v22
  %v103 = vpack.c.b16 %v94, %v91
  %v104 = vpack.c.b16 %v95, %v92
  %v105 = vpack.c.b16 %v96, %v93
  %v106 = vpack.c.b16 %v100, %v97
  %v107 = vpack.c.b16 %v101, %v98
  %v108 = vpack.c.b16 %v102, %v99
  %v149 = vunpack.c.l.b16 %v23
  %v150 = vunpack.c.l.b16 %v24
  %v151 = vunpack.c.l.b16 %v25
  %v152 = vunpack.c.l.b16 %v26
  %v153 = vunpack.c.l.b16 %v27
  %v154 = vunpack.c.l.b16 %v28
  %v155 = vunpack.c.l.b16 %v29
  %v156 = vunpack.c.l.b16 %v30
  %v157 = vunpack.c.l.b16 %v31
  %v158 = vunpack.c.l.b16 %v32
  %v159 = vunpack.c.l.b16 %v33
  %v160 = vunpack.c.l.b16 %v34
  %v161 = vunpack.c.l.b16 %v35
  %v162 = vunpack.c.l.b16 %v36
  %v163 = vunpack.c.l.b16 %v37
  %v164 = vunpack.c.l.b16 %v38
  %v165 = vunpack.c.l.b16 %v39
  %v166 = vunpack.c.l.b16 %v40
  %v167 = vunpack.c.l.b16 %v41
  %v168 = vunpack.c.l.b16 %v42
  %v169 = vunpack.c.l.b16 %v43
  %v170 = vunpack.c.l.b16 %v44
  %v171 = vunpack.c.l.b16 %v45
  %v172 = vunpack.c.l.b16 %v46
  %v173 = vunpack.c.l.b16 %v47
  %v174 = vunpack.c.l.b16 %v48
  %v175 = vunpack.c.l.b16 %v49
  %v176 = vunpack.c.l.b16 %v50
  %v177 = vunpack.c.l.b16 %v51
  %v178 = vunpack.c.l.b16 %v52
  %v179 = vunpack.c.l.b16 %v53
  %v180 = vunpack.c.l.b16 %v54
  %v181 = vunpack.c.l.b16 %v55
  %v182 = vunpack.c.l.b16 %v56
  %v183 = vunpack.c.l.b16 %v57
  %v184 = vunpack.c.l.b16 %v58
  %v185 = vpack.c.b16 %v150, %v149
  %v186 = vpack.c.b16 %v152, %v151
  %v187 = vpack.c.b16 %v154, %v153
  %v188 = vpack.c.b16 %v156, %v155
  %v189 = vpack.c.b16 %v158, %v157
  %v190 = vpack.c.b16 %v160, %v159
  %v191 = vpack.c.b16 %v162, %v161
  %v192 = vpack.c.b16 %v164, %v163
  %v193 = vpack.c.b16 %v166, %v165
  %v194 = vpack.c.b16 %v168, %v167
  %v195 = vpack.c.b16 %v170, %v169
  %v196 = vpack.c.b16 %v172, %v171
  %v197 = vpack.c.b16 %v174, %v173
  %v198 = vpack.c.b16 %v176, %v175
  %v199 = vpack.c.b16 %v178, %v177
  %v200 = vpack.c.b16 %v180, %v179
  %v201 = vpack.c.b16 %v182, %v181
  %v202 = vpack.c.b16 %v184, %v183
  %vm221 = vcmask 261120
  %v223 = vsel %vm221, %v105, 0
  %v226 = vsel %vm221, %v108, 0
  %228 = vmatprep.subr.bf16.mxu0 0
  %229 = vmatpush1.bf16.msra.mxu0 %v192
  %230 = vmatprep.subr.bf16.mxu0 0
  %231 = vmatpush1.bf16.msra.mxu0 %v191
  %232 = vmatprep.subr.bf16.mxu0 0
  %233 = vmatpush1.bf16.msra.mxu0 %v190
  %234 = vmatprep.subr.bf16.mxu0 0
  %235 = vmatpush1.bf16.msra.mxu0 %v189
  %236 = vmatprep.subr.bf16.mxu0 0
  %237 = vmatpush1.bf16.msra.mxu0 %v188
  %238 = vmatprep.subr.bf16.mxu0 0
  %239 = vmatpush1.bf16.msra.mxu0 %v187
  %240 = vmatprep.subr.bf16.mxu0 0
  %241 = vmatpush1.bf16.msra.mxu0 %v186
  %242 = vmatprep.subr.bf16.mxu0 0
  %243 = vmatpush1.bf16.msra.mxu0 %v185
  %244 = vmatprep.subr.bf16.mxu0 0
  %245 = vmatpush2.bf16.msra.mxu0 %v200
  %246 = vmatprep.subr.bf16.mxu0 0
  %247 = vmatpush2.bf16.msra.mxu0 %v199
  %248 = vmatprep.subr.bf16.mxu0 0
  %249 = vmatpush2.bf16.msra.mxu0 %v198
  %250 = vmatprep.subr.bf16.mxu0 0
  %251 = vmatpush2.bf16.msra.mxu0 %v197
  %252 = vmatprep.subr.bf16.mxu0 0
  %253 = vmatpush2.bf16.msra.mxu0 %v196
  %254 = vmatprep.subr.bf16.mxu0 0
  %255 = vmatpush2.bf16.msra.mxu0 %v195
  %256 = vmatprep.subr.bf16.mxu0 0
  %257 = vmatpush2.bf16.msra.mxu0 %v194
  %258 = vmatprep.subr.bf16.mxu0 0
  %259 = vmatpush2.bf16.msra.mxu0 %v193
  %260 = vmatprep.mubr.bf16.mxu0 %v104
  %261 = vmatmul.mubr.bf16.gmra.mxu0 %v103
  %v262 = vpop.f32.mrf.mxu0
  %v263 = vadd.f32 %v66, %v262
  %v264 = vpop.f32.mrf.mxu0
  %v265 = vpop.f32.mrf.mxu0
  %v266 = vadd.f32 %v71, %v265
  %v267 = vpop.f32.mrf.mxu0
  %268 = vmatprep.mubr.bf16.mxu0 %v107
  %269 = vmatmul.mubr.bf16.gmra.mxu0 %v106
  %v270 = vpop.f32.mrf.mxu0
  %v271 = vadd.f32 %v76, %v270
  %v272 = vpop.f32.mrf.mxu0
  %v273 = vpop.f32.mrf.mxu0
  %v274 = vadd.f32 %v81, %v273
  %v275 = vpop.f32.mrf.mxu0
  %276 = vdwg.mxu0
  %277 = vmatprep.subr.bf16.mxu0 0
  %278 = vmatpush1.bf16.msra.mxu0 0
  %279 = vmatprep.subr.bf16.mxu0 0
  %280 = vmatpush1.bf16.msra.mxu0 0
  %281 = vmatprep.subr.bf16.mxu0 0
  %282 = vmatpush1.bf16.msra.mxu0 0
  %283 = vmatprep.subr.bf16.mxu0 0
  %284 = vmatpush1.bf16.msra.mxu0 0
  %285 = vmatprep.subr.bf16.mxu0 0
  %286 = vmatpush1.bf16.msra.mxu0 0
  %287 = vmatprep.subr.bf16.mxu0 0
  %288 = vmatpush1.bf16.msra.mxu0 0
  %289 = vmatprep.subr.bf16.mxu0 0
  %290 = vmatpush1.bf16.msra.mxu0 %v202
  %291 = vmatprep.subr.bf16.mxu0 0
  %292 = vmatpush1.bf16.msra.mxu0 %v201
  %293 = vmatprep.subr.bf16.mxu0 0
  %294 = vmatpush2.bf16.msra.mxu0 0
  %295 = vmatprep.subr.bf16.mxu0 0
  %296 = vmatpush2.bf16.msra.mxu0 0
  %297 = vmatprep.subr.bf16.mxu0 0
  %298 = vmatpush2.bf16.msra.mxu0 0
  %299 = vmatprep.subr.bf16.mxu0 0
  %300 = vmatpush2.bf16.msra.mxu0 0
  %301 = vmatprep.subr.bf16.mxu0 0
  %302 = vmatpush2.bf16.msra.mxu0 0
  %303 = vmatprep.subr.bf16.mxu0 0
  %304 = vmatpush2.bf16.msra.mxu0 0
  %305 = vmatprep.subr.bf16.mxu0 0
  %306 = vmatpush2.bf16.msra.mxu0 0
  %307 = vmatprep.subr.bf16.mxu0 0
  %308 = vmatpush2.bf16.msra.mxu0 0
  %309 = vmatprep.mubr.bf16.mxu0 0
  %310 = vmatmul.mubr.bf16.gmra.mxu0 %v223
  %v311 = vpop.f32.mrf.mxu0
  %v312 = vadd.f32 %v263, %v311
  %v313 = vpop.f32.mrf.mxu0
  %v314 = vpop.f32.mrf.mxu0
  %v315 = vadd.f32 %v266, %v314
  %v316 = vpop.f32.mrf.mxu0
  %317 = vmatprep.mubr.bf16.mxu0 0
  %318 = vmatmul.mubr.bf16.gmra.mxu0 %v226
  %v319 = vpop.f32.mrf.mxu0
  %v320 = vadd.f32 %v271, %v319
  %v321 = vpop.f32.mrf.mxu0
  %v322 = vpop.f32.mrf.mxu0
  %v323 = vadd.f32 %v274, %v322
  %v324 = vpop.f32.mrf.mxu0
  %325 = vdwg.mxu0
  %v326 = vmul.f32 %v312, 0.5
  %v327 = vmul.f32 %v315, 0.5
  %v328 = vmul.f32 %v320, 0.5
  %v329 = vmul.f32 %v323, 0.5
  %v330 = vmul.f32 %v312, 0.70710677
  %v331 = vmul.f32 %v315, 0.70710677
  %v332 = vmul.f32 %v320, 0.70710677
  %v333 = vmul.f32 %v323, 0.70710677
  %v334 = verf.f32.pop %v330
  %v335 = verf.f32.pop %v331
  %v336 = verf.f32.pop %v332
  %v337 = verf.f32.pop %v333
  %v338 = vadd.f32 %v334, 1.0
  %v339 = vadd.f32 %v335, 1.0
  %v340 = vadd.f32 %v336, 1.0
  %v341 = vadd.f32 %v337, 1.0
  %v342 = vmul.f32 %v326, %v338
  %v343 = vmul.f32 %v327, %v339
  %v344 = vmul.f32 %v328, %v340
  %v345 = vmul.f32 %v329, %v341
  %vm346 = vcmask 785408
  %347 = vst.msk [vmem:[%s3] sm:$0xff] %vm346, %v342
  %348 = vst.msk [vmem:[%s3 + $0x8] sm:$0xff] %vm346, %v343
  %349 = vst.msk [vmem:[%s3 + $0x10] sm:$0xff] %vm346, %v344
  %350 = vst.msk [vmem:[%s3 + $0x18] sm:$0xff] %vm346, %v345
  // Predicated region
  $region14: #{timesnet_forecast.9} parent=0 // pred_check
    _
  $region15: #{timesnet_forecast.9} parent=0 // pred_check_branch
    %352 = sbr.rel (0) target = $region17
  $region16: #{timesnet_forecast.9} parent=0 // pred_region
    _
  $region17: #{timesnet_forecast.9} parent=0 // pred_fallthru
    _
  // Predicated region
  $region18: #{timesnet_forecast.9} parent=0 // pred_check
    _
  $region19: #{timesnet_forecast.9} parent=0 // pred_check_branch
    %354 = sbr.rel (0) target = $region21
  $region20: #{timesnet_forecast.9} parent=0 // pred_region
    _
  $region21: #{timesnet_forecast.9} parent=0 // pred_fallthru
    _

// kernel: timesnet_forecast.15
$region0: #{timesnet_forecast.15}
  #allocation0 [shape = 'u32[]', space=smem, size = 0x4, offset = 0x4, fixed_abs, tag = 'smem constant byte address 0x4 - core index']
  #allocation1 [shape = 'u32[144,128]{1,0:T(1,128)}', space=vmem, size = 0x12000, scoped, tag = 'internal scratch']
  %s0 = inlined_call_operand.vmem [shape: f32[2,8,32], index: 0, kind: input, shape index: {}]
  %s1 = inlined_call_operand.vmem [shape: f32[32,4], index: 1, kind: input, shape index: {}]
  %s2 = inlined_call_operand.vmem [shape: f32[1,4], index: 2, kind: input, shape index: {}]
  %s3 = inlined_call_operand.vmem [shape: f32[2,1,4], index: 3, kind: input, shape index: {}]
  %s4 = inlined_call_operand.vmem [shape: f32[2,1,4], index: 4, kind: input, shape index: {}]
  %s5 = inlined_call_operand.vmem [shape: f32[2,8,4], index: 5, kind: output, shape index: {}]
  %s6 = sld [smem:[#allocation0]]
  $region30: #{timesnet_forecast.15} parent=0
    _
  %s8 = ssub.s32 1, %s6
  %s9 = scalar_select 0, %s8, %s6
  // Predicated region
  $region2: #{timesnet_forecast.15} parent=0 // pred_check
    _
  $region3: #{timesnet_forecast.15} parent=0 // pred_check_branch
    %11 = sbr.rel (0) target = $region5
  $region4: #{timesnet_forecast.15} parent=0 // pred_region
    _
  $region5: #{timesnet_forecast.15} parent=0 // pred_fallthru
    _
  // Predicated region
  $region6: #{timesnet_forecast.15} parent=0 // pred_check
    _
  $region7: #{timesnet_forecast.15} parent=0 // pred_check_branch
    %13 = sbr.rel (0) target = $region9
  $region8: #{timesnet_forecast.15} parent=0 // pred_region
    _
  $region9: #{timesnet_forecast.15} parent=0 // pred_fallthru
    _
  // Predicated region
  $region10: #{timesnet_forecast.15} parent=0 // pred_check
    _
  $region11: #{timesnet_forecast.15} parent=0 // pred_check_branch
    %15 = sbr.rel (0) target = $region13
  $region12: #{timesnet_forecast.15} parent=0 // pred_region
    _
  $region13: #{timesnet_forecast.15} parent=0 // pred_fallthru
    _
  // Predicated region
  $region14: #{timesnet_forecast.15} parent=0 // pred_check
    _
  $region15: #{timesnet_forecast.15} parent=0 // pred_check_branch
    %17 = sbr.rel (0) target = $region17
  $region16: #{timesnet_forecast.15} parent=0 // pred_region
    _
  $region17: #{timesnet_forecast.15} parent=0 // pred_fallthru
    _
  // Predicated region
  $region18: #{timesnet_forecast.15} parent=0 // pred_check
    _
  $region19: #{timesnet_forecast.15} parent=0 // pred_check_branch
    %19 = sbr.rel (0) target = $region21
  $region20: #{timesnet_forecast.15} parent=0 // pred_region
    _
  $region21: #{timesnet_forecast.15} parent=0 // pred_fallthru
    _
  %v20 = vld [vmem:[%s0] sm:$0xff]
  %v21 = vld [vmem:[%s1] sm:$0xff]
  %v22 = vld [vmem:[%s1 + $0x8] sm:$0xff]
  %v23 = vld [vmem:[%s1 + $0x10] sm:$0xff]
  %v24 = vld [vmem:[%s1 + $0x18] sm:$0xff]
  %v25 = vld [vmem:[%s2] sm:$0x1]
  %v27 = vlaneseq
  %v28 = vshrl.u32 %v27, 7
  %v29 = vsub.s32 0, %v28
  %v30 = vrot.slane %v25, %v29
  %vm32 = vcmask 261120
  %v34 = vsel %vm32, %v20, 0
  %36 = vmatprep.subr.mxu0 0.0
  %37 = vmatpush1.msra.mxu0 0.0
  %38 = vmatprep.subr.mxu0 0.0
  %39 = vmatpush1.msra.mxu0 0.0
  %40 = vmatprep.subr.mxu0 0.0
  %41 = vmatpush1.msra.mxu0 0.0
  %42 = vmatprep.subr.mxu0 0.0
  %43 = vmatpush1.msra.mxu0 0.0
  %44 = vmatprep.subr.mxu0 0.0
  %45 = vmatpush1.msra.mxu0 0.0
  %46 = vmatprep.subr.mxu0 0.0
  %47 = vmatpush1.msra.mxu0 0.0
  %48 = vmatprep.subr.mxu0 0.0
  %49 = vmatpush1.msra.mxu0 0.0
  %50 = vmatprep.subr.mxu0 0.0
  %51 = vmatpush1.msra.mxu0 0.0
  %52 = vmatprep.subr.mxu0 0.0
  %53 = vmatpush1.msra.mxu0 0.0
  %54 = vmatprep.subr.mxu0 0.0
  %55 = vmatpush1.msra.mxu0 0.0
  %56 = vmatprep.subr.mxu0 0.0
  %57 = vmatpush1.msra.mxu0 0.0
  %58 = vmatprep.subr.mxu0 0.0
  %59 = vmatpush1.msra.mxu0 0.0
  %60 = vmatprep.subr.mxu0 0.0
  %61 = vmatpush1.msra.mxu0 %v24
  %62 = vmatprep.subr.mxu0 0.0
  %63 = vmatpush1.msra.mxu0 %v23
  %64 = vmatprep.subr.mxu0 0.0
  %65 = vmatpush1.msra.mxu0 %v22
  %66 = vmatprep.subr.mxu0 0.0
  %67 = vmatpush1.msra.mxu0 %v21
  %68 = vmatprep.subr.mxu0 0.0
  %69 = vmatpush2.msra.mxu0 0.0
  %70 = vmatprep.subr.mxu0 0.0
  %71 = vmatpush2.msra.mxu0 0.0
  %72 = vmatprep.subr.mxu0 0.0
  %73 = vmatpush2.msra.mxu0 0.0
  %74 = vmatprep.subr.mxu0 0.0
  %75 = vmatpush2.msra.mxu0 0.0
  %76 = vmatprep.subr.mxu0 0.0
  %77 = vmatpush2.msra.mxu0 0.0
  %78 = vmatprep.subr.mxu0 0.0
  %79 = vmatpush2.msra.mxu0 0.0
  %80 = vmatprep.subr.mxu0 0.0
  %81 = vmatpush2.msra.mxu0 0.0
  %82 = vmatprep.subr.mxu0 0.0
  %83 = vmatpush2.msra.mxu0 0.0
  %84 = vmatprep.subr.mxu0 0.0
  %85 = vmatpush2.msra.mxu0 0.0
  %86 = vmatprep.subr.mxu0 0.0
  %87 = vmatpush2.msra.mxu0 0.0
  %88 = vmatprep.subr.mxu0 0.0
  %89 = vmatpush2.msra.mxu0 0.0
  %90 = vmatprep.subr.mxu0 0.0
  %91 = vmatpush2.msra.mxu0 0.0
  %92 = vmatprep.subr.mxu0 0.0
  %93 = vmatpush2.msra.mxu0 0.0
  %94 = vmatprep.subr.mxu0 0.0
  %95 = vmatpush2.msra.mxu0 0.0
  %96 = vmatprep.subr.mxu0 0.0
  %97 = vmatpush2.msra.mxu0 0.0
  %98 = vmatprep.subr.mxu0 0.0
  %99 = vmatpush2.msra.mxu0 0.0
  %100 = vmatprep.mubr.f32.mxu0 0.0
  %101 = vmatmul.mubr.f32.gmra.mxu0 %v34
  %v102 = vpop.f32.mrf.mxu0
  %v103 = vadd.f32 %v30, %v102
  %v104 = vpop.f32.mrf.mxu0
  %105 = vdwg.mxu0
  %v106 = vld [vmem:[%s3] sm:$0x1]
  %v108 = vlaneseq
  %v109 = vshrl.u32 %v108, 7
  %v110 = vsub.s32 0, %v109
  %v111 = vrot.slane %v106, %v110
  %v113 = vmul.f32 %v103, %v111
  %v114 = vld [vmem:[%s4] sm:$0x1]
  %v116 = vlaneseq
  %v117 = vshrl.u32 %v116, 7
  %v118 = vsub.s32 0, %v117
  %v119 = vrot.slane %v114, %v118
  %v121 = vadd.f32 %v113, %v119
  %vm122 = vcmask 31744
  %123 = vst.msk [vmem:[%s5] sm:$0xff] %vm122, %v121
  %s124 = scalar_lea.vmem %s0, 8
  %v125 = vld [vmem:[%s124] sm:$0xff]
  %v126 = vld [vmem:[%s1] sm:$0xff]
  %v127 = vld [vmem:[%s1 + $0x8] sm:$0xff]
  %v128 = vld [vmem:[%s1 + $0x10] sm:$0xff]
  %v129 = vld [vmem:[%s1 + $0x18] sm:$0xff]
  %v130 = vld [vmem:[%s2] sm:$0x1]
  %v132 = vlaneseq
  %v133 = vshrl.u32 %v132, 7
  %v134 = vsub.s32 0, %v133
  %v135 = vrot.slane %v130, %v134
  %v138 = vsel %vm32, %v125, 0
  %140 = vmatprep.subr.mxu0 0.0
  %141 = vmatpush1.msra.mxu0 0.0
  %142 = vmatprep.subr.mxu0 0.0
  %143 = vmatpush1.msra.mxu0 0.0
  %144 = vmatprep.subr.mxu0 0.0
  %145 = vmatpush1.msra.mxu0 0.0
  %146 = vmatprep.subr.mxu0 0.0
  %147 = vmatpush1.msra.mxu0 0.0
  %148 = vmatprep.subr.mxu0 0.0
  %149 = vmatpush1.msra.mxu0 0.0
  %150 = vmatprep.subr.mxu0 0.0
  %151 = vmatpush1.msra.mxu0 0.0
  %152 = vmatprep.subr.mxu0 0.0
  %153 = vmatpush1.msra.mxu0 0.0
  %154 = vmatprep.subr.mxu0 0.0
  %155 = vmatpush1.msra.mxu0 0.0
  %156 = vmatprep.subr.mxu0 0.0
  %157 = vmatpush1.msra.mxu0 0.0
  %158 = vmatprep.subr.mxu0 0.0
  %159 = vmatpush1.msra.mxu0 0.0
  %160 = vmatprep.subr.mxu0 0.0
  %161 = vmatpush1.msra.mxu0 0.0
  %162 = vmatprep.subr.mxu0 0.0
  %163 = vmatpush1.msra.mxu0 0.0
  %164 = vmatprep.subr.mxu0 0.0
  %165 = vmatpush1.msra.mxu0 %v129
  %166 = vmatprep.subr.mxu0 0.0
  %167 = vmatpush1.msra.mxu0 %v128
  %168 = vmatprep.subr.mxu0 0.0
  %169 = vmatpush1.msra.mxu0 %v127
  %170 = vmatprep.subr.mxu0 0.0
  %171 = vmatpush1.msra.mxu0 %v126
  %172 = vmatprep.subr.mxu0 0.0
  %173 = vmatpush2.msra.mxu0 0.0
  %174 = vmatprep.subr.mxu0 0.0
  %175 = vmatpush2.msra.mxu0 0.0
  %176 = vmatprep.subr.mxu0 0.0
  %177 = vmatpush2.msra.mxu0 0.0
  %178 = vmatprep.subr.mxu0 0.0
  %179 = vmatpush2.msra.mxu0 0.0
  %180 = vmatprep.subr.mxu0 0.0
  %181 = vmatpush2.msra.mxu0 0.0
  %182 = vmatprep.subr.mxu0 0.0
  %183 = vmatpush2.msra.mxu0 0.0
  %184 = vmatprep.subr.mxu0 0.0
  %185 = vmatpush2.msra.mxu0 0.0
  %186 = vmatprep.subr.mxu0 0.0
  %187 = vmatpush2.msra.mxu0 0.0
  %188 = vmatprep.subr.mxu0 0.0
  %189 = vmatpush2.msra.mxu0 0.0
  %190 = vmatprep.subr.mxu0 0.0
  %191 = vmatpush2.msra.mxu0 0.0
  %192 = vmatprep.subr.mxu0 0.0
  %193 = vmatpush2.msra.mxu0 0.0
  %194 = vmatprep.subr.mxu0 0.0
  %195 = vmatpush2.msra.mxu0 0.0
  %196 = vmatprep.subr.mxu0 0.0
  %197 = vmatpush2.msra.mxu0 0.0
  %198 = vmatprep.subr.mxu0 0.0
  %199 = vmatpush2.msra.mxu0 0.0
  %200 = vmatprep.subr.mxu0 0.0
  %201 = vmatpush2.msra.mxu0 0.0
  %202 = vmatprep.subr.mxu0 0.0
  %203 = vmatpush2.msra.mxu0 0.0
  %204 = vmatprep.mubr.f32.mxu0 0.0
  %205 = vmatmul.mubr.f32.gmra.mxu0 %v138
  %v206 = vpop.f32.mrf.mxu0
  %v207 = vadd.f32 %v135, %v206
  %v208 = vpop.f32.mrf.mxu0
  %209 = vdwg.mxu0
  %s210 = scalar_lea.vmem %s3, 1
  %v211 = vld [vmem:[%s210] sm:$0x1]
  %v213 = vlaneseq
  %v214 = vshrl.u32 %v213, 7
  %v215 = vsub.s32 0, %v214
  %v216 = vrot.slane %v211, %v215
  %v218 = vmul.f32 %v207, %v216
  %s219 = scalar_lea.vmem %s4, 1
  %v220 = vld [vmem:[%s219] sm:$0x1]
  %v222 = vlaneseq
  %v223 = vshrl.u32 %v222, 7
  %v224 = vsub.s32 0, %v223
  %v225 = vrot.slane %v220, %v224
  %v227 = vadd.f32 %v218, %v225
  %s228 = scalar_lea.vmem %s5, 8
  %229 = vst.msk [vmem:[%s228] sm:$0xff] %vm122, %v227
  // Predicated region
  $region22: #{timesnet_forecast.15} parent=0 // pred_check
    _
  $region23: #{timesnet_forecast.15} parent=0 // pred_check_branch
    %231 = sbr.rel (0) target = $region25
  $region24: #{timesnet_forecast.15} parent=0 // pred_region
    _
  $region25: #{timesnet_forecast.15} parent=0 // pred_fallthru
    _
  // Predicated region
  $region26: #{timesnet_forecast.15} parent=0 // pred_check
    _
  $region27: #{timesnet_forecast.15} parent=0 // pred_check_branch
    %233 = sbr.rel (0) target = $region29
  $region28: #{timesnet_forecast.15} parent=0 // pred_region
    _
  $region29: #{timesnet_forecast.15} parent=0 // pred_fallthru
    _

// kernel: timesnet_forecast.11
$region0: #{timesnet_forecast.11}
  #allocation0 [shape = 'u32[]', space=smem, size = 0x4, offset = 0x4, fixed_abs, tag = 'smem constant byte address 0x4 - core index']
  #allocation1 [shape = 'u32[144,128]{1,0:T(1,128)}', space=vmem, size = 0x12000, scoped, tag = 'internal scratch']
  %s0 = inlined_call_operand.vmem [shape: f32[2,2], index: 0, kind: input, shape index: {}]
  %s1 = inlined_call_operand.vmem [shape: f32[2,2,24,32], index: 1, kind: input, shape index: {}]
  %s2 = inlined_call_operand.vmem [shape: f32[2,24,32], index: 2, kind: input, shape index: {}]
  %s3 = inlined_call_operand.vmem [shape: f32[1,32], index: 3, kind: input, shape index: {}]
  %s4 = inlined_call_operand.vmem [shape: f32[1,32], index: 4, kind: input, shape index: {}]
  %s5 = inlined_call_operand.vmem [shape: f32[2,24,32], index: 5, kind: output, shape index: {}]
  %s6 = sld [smem:[#allocation0]]
  $region34: #{timesnet_forecast.11} parent=0
    _
  %s8 = ssub.s32 1, %s6
  %s9 = scalar_select 0, %s8, %s6
  $region1: #{timesnet_forecast.11} parent=0
    #allocation2 [shape = 'u8[1024]{0}', space=smem, size = 0x400, scoped, tag = 'input window, operand 0, single buffered']
    #allocation3 [shape = 's32[1]{0}', space=sflag, size = 0x4, scoped, tag = 'scoped memory for timesnet_forecast.11']
    %10 = vsyncpa [#allocation3], 0
    // Predicated region
    $region2: #{timesnet_forecast.11} parent=1 // pred_check
      _
    $region3: #{timesnet_forecast.11} parent=1 // pred_check_branch
      %12 = sbr.rel (0) target = $region5
    $region4: #{timesnet_forecast.11} parent=1 // pred_region
      %s14 = ssub.s32 32, 32
      %15 = vsyncadd [#allocation3], %s14
      %s17 = sshll.u32 %s0, 4
      %s18 = int_to_ptr.vmem [resolvable:$true] %s17
      %20 = dma.vmem_to_smem %s18, 32, [#allocation2], [#allocation3]
    $region5: #{timesnet_forecast.11} parent=1 // pred_fallthru
      _
    // Predicated region
    $region6: #{timesnet_forecast.11} parent=1 // pred_check
      _
    $region7: #{timesnet_forecast.11} parent=1 // pred_check_branch
      %22 = sbr.rel (0) target = $region9
    $region8: #{timesnet_forecast.11} parent=1 // pred_region
      _
    $region9: #{timesnet_forecast.11} parent=1 // pred_fallthru
      _
    // Predicated region
    $region10: #{timesnet_forecast.11} parent=1 // pred_check
      _
    $region11: #{timesnet_forecast.11} parent=1 // pred_check_branch
      %24 = sbr.rel (0) target = $region13
    $region12: #{timesnet_forecast.11} parent=1 // pred_region
      _
    $region13: #{timesnet_forecast.11} parent=1 // pred_fallthru
      _
    // Predicated region
    $region14: #{timesnet_forecast.11} parent=1 // pred_check
      _
    $region15: #{timesnet_forecast.11} parent=1 // pred_check_branch
      %26 = sbr.rel (0) target = $region17
    $region16: #{timesnet_forecast.11} parent=1 // pred_region
      _
    $region17: #{timesnet_forecast.11} parent=1 // pred_fallthru
      _
    // Predicated region
    $region18: #{timesnet_forecast.11} parent=1 // pred_check
      _
    $region19: #{timesnet_forecast.11} parent=1 // pred_check_branch
      %28 = sbr.rel (0) target = $region21
    $region20: #{timesnet_forecast.11} parent=1 // pred_region
      _
    $region21: #{timesnet_forecast.11} parent=1 // pred_fallthru
      _
    // Predicated region
    $region22: #{timesnet_forecast.11} parent=1 // pred_check
      _
    $region23: #{timesnet_forecast.11} parent=1 // pred_check_branch
      %30 = sbr.rel (0) target = $region25
    $region24: #{timesnet_forecast.11} parent=1 // pred_region
      %31 = dma.done [#allocation3], 32
    $region25: #{timesnet_forecast.11} parent=1 // pred_fallthru
      _
    %32 = sfence
    %v33 = vld [vmem:[%s2] sm:$0xff]
    %v34 = vld [vmem:[%s2 + $0x8] sm:$0xff]
    %v35 = vld [vmem:[%s2 + $0x10] sm:$0xff]
    %s36 = sld [smem:[#allocation2]]
    %v37 = vld [vmem:[%s1] sm:$0xff]
    %v38 = vld [vmem:[%s1 + $0x8] sm:$0xff]
    %v39 = vld [vmem:[%s1 + $0x10] sm:$0xff]
    %v40 = vstv %s36
    %v41 = vmul.f32 %v40, %v37
    %v42 = vmul.f32 %v40, %v38
    %v43 = vmul.f32 %v40, %v39
    %v44 = vadd.f32 %v33, %v41
    %v45 = vadd.f32 %v34, %v42
    %v46 = vadd.f32 %v35, %v43
    %s47 = sld [smem:[#allocation2 + $0x1]]
    %s48 = scalar_lea.vmem %s1, 48
    %v49 = vld [vmem:[%s48] sm:$0xff]
    %v50 = vld [vmem:[%s48 + $0x8] sm:$0xff]
    %v51 = vld [vmem:[%s48 + $0x10] sm:$0xff]
    %v52 = vstv %s47
    %v53 = vmul.f32 %v52, %v49
    %v54 = vmul.f32 %v52, %v50
    %v55 = vmul.f32 %v52, %v51
    %v56 = vadd.f32 %v44, %v53
    %v57 = vadd.f32 %v45, %v54
    %v58 = vadd.f32 %v46, %v55
    %vm59 = vcmask 261120
    %v60 = vsel %vm59, %v56, 0.0
    %61 = vadd.xlane.f32.xlu0 %v60
    %v62 = vpop.xlane.xlu0 %61
    %v63 = vsel %vm59, %v57, 0.0
    %64 = vadd.xlane.f32.xlu0 %v63
    %v65 = vpop.xlane.xlu0 %64
    %v66 = vsel %vm59, %v58, 0.0
    %67 = vadd.xlane.f32.xlu0 %v66
    %v68 = vpop.xlane.xlu0 %67
    %v69 = vrcp.pop 32.0
    %v70 = vmul.f32 %v62, %v69
    %v71 = vmul.f32 %v65, %v69
    %v72 = vmul.f32 %v68, %v69
    %v73 = vsub.f32 %v56, %v70
    %v74 = vsub.f32 %v57, %v71
    %v75 = vsub.f32 %v58, %v72
    %v76 = vmul.f32 %v73, %v73
    %v77 = vmul.f32 %v74, %v74
    %v78 = vmul.f32 %v75, %v75
    %v79 = vsel %vm59, %v76, 0.0
    %80 = vadd.xlane.f32.xlu0 %v79
    %v81 = vpop.xlane.xlu0 %80
    %v82 = vsel %vm59, %v77, 0.0
    %83 = vadd.xlane.f32.xlu0 %v82
    %v84 = vpop.xlane.xlu0 %83
    %v85 = vsel %vm59, %v78, 0.0
    %86 = vadd.xlane.f32.xlu0 %v85
    %v87 = vpop.xlane.xlu0 %86
    %v88 = vmul.f32 %v81, %v69
    %v89 = vmul.f32 %v84, %v69
    %v90 = vmul.f32 %v87, %v69
    %v91 = vadd.f32 %v88, 1e-05
    %v92 = vadd.f32 %v89, 1e-05
    %v93 = vadd.f32 %v90, 1e-05
    %v94 = vrsqrt.pop %v91
    %v95 = vrsqrt.pop %v92
    %v96 = vrsqrt.pop %v93
    %v97 = vmul.f32 %v73, %v94
    %v98 = vmul.f32 %v74, %v95
    %v99 = vmul.f32 %v75, %v96
    %v100 = vld [vmem:[%s3] sm:$0x1]
    %v102 = vlaneseq
    %v103 = vshrl.u32 %v102, 7
    %v104 = vsub.s32 0, %v103
    %v105 = vrot.slane %v100, %v104
    %v107 = vmul.f32 %v97, %v105
    %v108 = vmul.f32 %v98, %v105
    %v109 = vmul.f32 %v99, %v105
    %v110 = vld [vmem:[%s4] sm:$0x1]
    %v112 = vlaneseq
    %v113 = vshrl.u32 %v112, 7
    %v114 = vsub.s32 0, %v113
    %v115 = vrot.slane %v110, %v114
    %v117 = vadd.f32 %v107, %v115
    %v118 = vadd.f32 %v108, %v115
    %v119 = vadd.f32 %v109, %v115
    %120 = vst.msk [vmem:[%s5] sm:$0xff] %vm59, %v117
    %121 = vst.msk [vmem:[%s5 + $0x8] sm:$0xff] %vm59, %v118
    %122 = vst.msk [vmem:[%s5 + $0x10] sm:$0xff] %vm59, %v119
    %s123 = scalar_lea.vmem %s2, 24
    %v124 = vld [vmem:[%s123] sm:$0xff]
    %v125 = vld [vmem:[%s123 + $0x8] sm:$0xff]
    %v126 = vld [vmem:[%s123 + $0x10] sm:$0xff]
    %s127 = sld [smem:[#allocation2 + $0x80]]
    %s128 = scalar_lea.vmem %s1, 24
    %v129 = vld [vmem:[%s128] sm:$0xff]
    %v130 = vld [vmem:[%s128 + $0x8] sm:$0xff]
    %v131 = vld [vmem:[%s128 + $0x10] sm:$0xff]
    %v132 = vstv %s127
    %v133 = vmul.f32 %v132, %v129
    %v134 = vmul.f32 %v132, %v130
    %v135 = vmul.f32 %v132, %v131
    %v136 = vadd.f32 %v124, %v133
    %v137 = vadd.f32 %v125, %v134
    %v138 = vadd.f32 %v126, %v135
    %s139 = sld [smem:[#allocation2 + $0x81]]
    %s140 = scalar_lea.vmem %s1, 72
    %v141 = vld [vmem:[%s140] sm:$0xff]
    %v142 = vld [vmem:[%s140 + $0x8] sm:$0xff]
    %v143 = vld [vmem:[%s140 + $0x10] sm:$0xff]
    %v144 = vstv %s139
    %v145 = vmul.f32 %v144, %v141
    %v146 = vmul.f32 %v144, %v142
    %v147 = vmul.f32 %v144, %v143
    %v148 = vadd.f32 %v136, %v145
    %v149 = vadd.f32 %v137, %v146
    %v150 = vadd.f32 %v138, %v147
    %v151 = vsel %vm59, %v148, 0.0
    %152 = vadd.xlane.f32.xlu0 %v151
    %v153 = vpop.xlane.xlu0 %152
    %v154 = vsel %vm59, %v149, 0.0
    %155 = vadd.xlane.f32.xlu0 %v154
    %v156 = vpop.xlane.xlu0 %155
    %v157 = vsel %vm59, %v150, 0.0
    %158 = vadd.xlane.f32.xlu0 %v157
    %v159 = vpop.xlane.xlu0 %158
    %v160 = vmul.f32 %v153, %v69
    %v161 = vmul.f32 %v156, %v69
    %v162 = vmul.f32 %v159, %v69
    %v163 = vsub.f32 %v148, %v160
    %v164 = vsub.f32 %v149, %v161
    %v165 = vsub.f32 %v150, %v162
    %v166 = vmul.f32 %v163, %v163
    %v167 = vmul.f32 %v164, %v164
    %v168 = vmul.f32 %v165, %v165
    %v169 = vsel %vm59, %v166, 0.0
    %170 = vadd.xlane.f32.xlu0 %v169
    %v171 = vpop.xlane.xlu0 %170
    %v172 = vsel %vm59, %v167, 0.0
    %173 = vadd.xlane.f32.xlu0 %v172
    %v174 = vpop.xlane.xlu0 %173
    %v175 = vsel %vm59, %v168, 0.0
    %176 = vadd.xlane.f32.xlu0 %v175
    %v177 = vpop.xlane.xlu0 %176
    %v178 = vmul.f32 %v171, %v69
    %v179 = vmul.f32 %v174, %v69
    %v180 = vmul.f32 %v177, %v69
    %v181 = vadd.f32 %v178, 1e-05
    %v182 = vadd.f32 %v179, 1e-05
    %v183 = vadd.f32 %v180, 1e-05
    %v184 = vrsqrt.pop %v181
    %v185 = vrsqrt.pop %v182
    %v186 = vrsqrt.pop %v183
    %v187 = vmul.f32 %v163, %v184
    %v188 = vmul.f32 %v164, %v185
    %v189 = vmul.f32 %v165, %v186
    %v190 = vld [vmem:[%s3] sm:$0x1]
    %v192 = vlaneseq
    %v193 = vshrl.u32 %v192, 7
    %v194 = vsub.s32 0, %v193
    %v195 = vrot.slane %v190, %v194
    %v197 = vmul.f32 %v187, %v195
    %v198 = vmul.f32 %v188, %v195
    %v199 = vmul.f32 %v189, %v195
    %v200 = vld [vmem:[%s4] sm:$0x1]
    %v202 = vlaneseq
    %v203 = vshrl.u32 %v202, 7
    %v204 = vsub.s32 0, %v203
    %v205 = vrot.slane %v200, %v204
    %v207 = vadd.f32 %v197, %v205
    %v208 = vadd.f32 %v198, %v205
    %v209 = vadd.f32 %v199, %v205
    %s210 = scalar_lea.vmem %s5, 24
    %211 = vst.msk [vmem:[%s210] sm:$0xff] %vm59, %v207
    %212 = vst.msk [vmem:[%s210 + $0x8] sm:$0xff] %vm59, %v208
    %213 = vst.msk [vmem:[%s210 + $0x10] sm:$0xff] %vm59, %v209
    // Predicated region
    $region26: #{timesnet_forecast.11} parent=1 // pred_check
      _
    $region27: #{timesnet_forecast.11} parent=1 // pred_check_branch
      %215 = sbr.rel (0) target = $region29
    $region28: #{timesnet_forecast.11} parent=1 // pred_region
      _
    $region29: #{timesnet_forecast.11} parent=1 // pred_fallthru
      _
    // Predicated region
    $region30: #{timesnet_forecast.11} parent=1 // pred_check
      _
    $region31: #{timesnet_forecast.11} parent=1 // pred_check_branch
      %217 = sbr.rel (0) target = $region33
    $region32: #{timesnet_forecast.11} parent=1 // pred_region
      _
    $region33: #{timesnet_forecast.11} parent=1 // pred_fallthru
      _
    %218 = vsyncpa [#allocation3], 1

</llo_original>
